<compile_context>
chip_gen: v7x
topology: tpu7x:2x2x1
jax: 0.10.0
libtpu: 0.0.40
codegen_flags: <defaults>
</compile_context>

<pallas_src>
import jax
import jax.numpy as jnp
from jax.experimental import pallas as pl
from jax.experimental.pallas import tpu as pltpu


# --------------------------------------------------------------------------- #
# Kernel
# --------------------------------------------------------------------------- #
def _pwave_kernel(x_ref, w1, b1, w2, b2, w3, b3, w4, b4, w5, b5, w6, b6,
                  out_ref):
    def dense_relu(h, w_ref, b_ref):
        return jnp.maximum(
            jnp.dot(h, w_ref[...], preferred_element_type=jnp.float32)
            + b_ref[...], 0.0)

    h = x_ref[...]                    # (TB, W*Cin) f32, lane index = t*Cin + c
    h = dense_relu(h, w1, b1)         # conv1 + relu -> (TB, T1*C1)
    h = dense_relu(h, w2, b2)         # conv2 + relu -> (TB, T2*C2)
    # dropout1: identity (inference)
    h = dense_relu(h, w3, b3)         # conv3 + relu -> (TB, T3*C3)
    h = dense_relu(h, w4, b4)         # fc1   + relu -> (TB, F1)
    # dropout2: identity (inference)
    h = dense_relu(h, w5, b5)         # fc2   + relu -> (TB, F2)
    z = jnp.dot(h, w6[...], preferred_element_type=jnp.float32) + b6[...]
    out_ref[...] = jax.nn.sigmoid(z)  # (TB, 1)


# --------------------------------------------------------------------------- #
# Wrapper / weight preparation
# --------------------------------------------------------------------------- #
def _round_up(n, m):
    return ((n + m - 1) // m) * m


def _conv_toeplitz(w, lin):
    """PyTorch Conv1d weight (Cout, Cin, K) as a dense (lin*Cin, lout*Cout)
    matrix acting on time-major lane-folded activations (idx = t*C + c)."""
    cout, cin, k = w.shape
    lout = lin - k + 1
    w_t = jnp.transpose(w, (2, 1, 0)).astype(jnp.float32)      # (K, Cin, Cout)
    big = jnp.zeros((lin, cin, lout, cout), jnp.float32)
    for t in range(lout):                                       # lout <= 13
        big = big.at[t:t + k, :, t, :].set(w_t)
    return big.reshape(lin * cin, lout * cout)


def pwave_cnn_forward(x, params, *, tile_b=512):
    """x: (B, 3, W) float32 (PyTorch NCW). Returns (B, 1) float32."""
    (c1w, c1b, c2w, c2b, c3w, c3b,
     f1w, f1b, f2w, f2b, f3w, f3b) = params
    B, cin, W = x.shape
    C1, _, K1 = c1w.shape
    C2, _, K2 = c2w.shape
    C3, _, K3 = c3w.shape
    T1 = W - K1 + 1
    T2 = T1 - K2 + 1
    T3 = T2 - K3 + 1
    F1, F2 = f1w.shape[0], f2w.shape[0]

    # ---- one-time weight preparation (plain JAX, tiny tensors) ----
    w1 = _conv_toeplitz(c1w, W)                                  # (W*3,   T1*C1)
    w2 = _conv_toeplitz(c2w, T1)                                 # (T1*C1, T2*C2)
    w3 = _conv_toeplitz(c3w, T2)                                 # (T2*C2, T3*C3)
    b1 = jnp.tile(c1b.astype(jnp.float32), T1).reshape(1, T1 * C1)
    b2 = jnp.tile(c2b.astype(jnp.float32), T2).reshape(1, T2 * C2)
    b3 = jnp.tile(c3b.astype(jnp.float32), T3).reshape(1, T3 * C3)
    # PyTorch flattens (B, C3, T3) channel-major (idx = c*T3 + t); our kernel
    # activation is time-major (idx = t*C3 + c) -> permute fc1 columns.
    w4 = jnp.transpose(f1w.reshape(F1, C3, T3), (2, 1, 0)).reshape(T3 * C3, F1)
    w4 = w4.astype(jnp.float32)
    b4 = f1b.reshape(1, F1).astype(jnp.float32)
    w5 = jnp.transpose(f2w, (1, 0)).astype(jnp.float32)          # (F1, F2)
    b5 = f2b.reshape(1, F2).astype(jnp.float32)
    w6 = jnp.transpose(f3w, (1, 0)).astype(jnp.float32)          # (F2, 1)
    b6 = f3b.reshape(1, 1).astype(jnp.float32)
    weights = (w1, b1, w2, b2, w3, b3, w4, b4, w5, b5, w6, b6)

    # ---- input layout: NCW -> (B, W*Cin) with lane index = t*Cin + c ----
    x_flat = jnp.transpose(x, (0, 2, 1)).reshape(B, W * cin).astype(jnp.float32)

    # ---- batch blocking ----
    TB = min(tile_b, _round_up(B, 8))
    B_pad = _round_up(B, TB)
    if B_pad != B:
        x_flat = jnp.pad(x_flat, ((0, B_pad - B), (0, 0)))
    num_tiles = B_pad // TB

    def _resident(arr):
        nd = arr.ndim
        return pl.BlockSpec(arr.shape, lambda b, _nd=nd: (0,) * _nd)

    flops = 2 * B_pad * (W * cin * T1 * C1 + T1 * C1 * T2 * C2
                         + T2 * C2 * T3 * C3 + T3 * C3 * F1 + F1 * F2 + F2)
    weight_bytes = sum(int(w.size) * 4 for w in weights)
    cost = pl.CostEstimate(
        flops=flops,
        transcendentals=B_pad,
        bytes_accessed=B_pad * (W * cin + 1) * 4 + weight_bytes)

    out = pl.pallas_call(
        _pwave_kernel,
        out_shape=jax.ShapeDtypeStruct((B_pad, 1), jnp.float32),
        grid=(num_tiles,),
        in_specs=[pl.BlockSpec((TB, W * cin), lambda b: (b, 0))]
                 + [_resident(w) for w in weights],
        out_specs=pl.BlockSpec((TB, 1), lambda b: (b, 0)),
        compiler_params=pltpu.CompilerParams(
            dimension_semantics=("parallel",)),
        cost_estimate=cost,
    )(x_flat, *weights)
    return out[:B]


# --------------------------------------------------------------------------- #
# Parameter init + pure-JAX reference
# --------------------------------------------------------------------------- #
def init_params(key, window_size=16, conv1_filters=32, conv2_filters=32,
                conv3_filters=32, fc1_neurons=44, fc2_neurons=18,
                k1=4, k2=4, k3=4):
    """PyTorch-convention parameter shapes (uniform +-1/sqrt(fan_in))."""
    conv1_out = window_size - k1 + 1
    conv2_out = conv1_out - k2 + 1
    conv3_out = conv2_out - k3 + 1
    specs = [
        ((conv1_filters, 3, k1), 3 * k1),
        ((conv1_filters,), 3 * k1),
        ((conv2_filters, conv1_filters, k2), conv1_filters * k2),
        ((conv2_filters,), conv1_filters * k2),
        ((conv3_filters, conv2_filters, k3), conv2_filters * k3),
        ((conv3_filters,), conv2_filters * k3),
        ((fc1_neurons, conv3_filters * conv3_out), conv3_filters * conv3_out),
        ((fc1_neurons,), conv3_filters * conv3_out),
        ((fc2_neurons, fc1_neurons), fc1_neurons),
        ((fc2_neurons,), fc1_neurons),
        ((1, fc2_neurons), fc2_neurons),
        ((1,), fc2_neurons),
    ]
    keys = jax.random.split(key, len(specs))
    params = []
    for (shape, fan_in), k in zip(specs, keys):
        bound = 1.0 / (fan_in ** 0.5)
        params.append(jax.random.uniform(k, shape, jnp.float32, -bound, bound))
    return tuple(params)


def ref_forward(x, params):
    """Pure-JAX reference with PyTorch layout/semantics (NCW, channel-major flatten)."""
    (c1w, c1b, c2w, c2b, c3w, c3b,
     f1w, f1b, f2w, f2b, f3w, f3b) = params

    def conv_relu(h, w, b):
        y = jax.lax.conv_general_dilated(
            h, w, window_strides=(1,), padding="VALID",
            dimension_numbers=("NCH", "OIH", "NCH"))
        return jnp.maximum(y + b[None, :, None], 0.0)

    h = conv_relu(x, c1w, c1b)
    h = conv_relu(h, c2w, c2b)
    h = conv_relu(h, c3w, c3b)
    h = h.reshape(h.shape[0], -1)
    h = jnp.maximum(h @ f1w.T + f1b, 0.0)
    h = jnp.maximum(h @ f2w.T + f2b, 0.0)
    return jax.nn.sigmoid(h @ f3w.T + f3b)


if __name__ == "__main__":
    key = jax.random.PRNGKey(0)
    k_param, k_x = jax.random.split(key)

    window_size = 16
    batch = 2
    params = init_params(k_param, window_size=window_size)
    x = jax.random.normal(k_x, (batch, 3, window_size), jnp.float32)

    out = pwave_cnn_forward(x, params)
    out = jax.block_until_ready(out)

    ref = ref_forward(x, params)
    assert out.shape == (batch, 1), out.shape
    assert jnp.allclose(out, ref, rtol=1e-4, atol=1e-5), (out, ref)
    print("KERNEL_OK")
</pallas_src>

<mosaic_0001>
module attributes {stable_mosaic.version = 11 : i64} {
  func.func @_pwave_kernel(%arg0: i32, %arg1: memref<8x48xf32, #tpu.memory_space<vmem>>, %arg2: memref<48x416xf32, #tpu.memory_space<vmem>>, %arg3: memref<1x416xf32, #tpu.memory_space<vmem>>, %arg4: memref<416x320xf32, #tpu.memory_space<vmem>>, %arg5: memref<1x320xf32, #tpu.memory_space<vmem>>, %arg6: memref<320x224xf32, #tpu.memory_space<vmem>>, %arg7: memref<1x224xf32, #tpu.memory_space<vmem>>, %arg8: memref<224x44xf32, #tpu.memory_space<vmem>>, %arg9: memref<1x44xf32, #tpu.memory_space<vmem>>, %arg10: memref<44x18xf32, #tpu.memory_space<vmem>>, %arg11: memref<1x18xf32, #tpu.memory_space<vmem>>, %arg12: memref<18x1xf32, #tpu.memory_space<vmem>>, %arg13: memref<1x1xf32, #tpu.memory_space<vmem>>, %arg14: memref<8x1xf32, #tpu.memory_space<vmem>>) attributes {dimension_semantics = [#tpu.dimension_semantics<parallel>], iteration_bounds = array<i64: 1>, scalar_prefetch = 0 : i64, scratch_operands = 0 : i64, tpu.core_type = #tpu.core_type<tc>, window_params = [{transform_indices = @transform_0, window_bounds = array<i64: 8, 48>}, {pipeline_mode = #tpu.pipeline_mode<synchronous>, transform_indices = @transform_1, window_bounds = array<i64: 48, 416>}, {pipeline_mode = #tpu.pipeline_mode<synchronous>, transform_indices = @transform_2, window_bounds = array<i64: 1, 416>}, {pipeline_mode = #tpu.pipeline_mode<synchronous>, transform_indices = @transform_3, window_bounds = array<i64: 416, 320>}, {pipeline_mode = #tpu.pipeline_mode<synchronous>, transform_indices = @transform_4, window_bounds = array<i64: 1, 320>}, {pipeline_mode = #tpu.pipeline_mode<synchronous>, transform_indices = @transform_5, window_bounds = array<i64: 320, 224>}, {pipeline_mode = #tpu.pipeline_mode<synchronous>, transform_indices = @transform_6, window_bounds = array<i64: 1, 224>}, {pipeline_mode = #tpu.pipeline_mode<synchronous>, transform_indices = @transform_7, window_bounds = array<i64: 224, 44>}, {pipeline_mode = #tpu.pipeline_mode<synchronous>, transform_indices = @transform_8, window_bounds = array<i64: 1, 44>}, {pipeline_mode = #tpu.pipeline_mode<synchronous>, transform_indices = @transform_9, window_bounds = array<i64: 44, 18>}, {pipeline_mode = #tpu.pipeline_mode<synchronous>, transform_indices = @transform_10, window_bounds = array<i64: 1, 18>}, {pipeline_mode = #tpu.pipeline_mode<synchronous>, transform_indices = @transform_11, window_bounds = array<i64: 18, 1>}, {pipeline_mode = #tpu.pipeline_mode<synchronous>, transform_indices = @transform_12, window_bounds = array<i64: 1, 1>}, {transform_indices = @transform_13, window_bounds = array<i64: 8, 1>}]} {
    %c0 = arith.constant 0 : index
    %c0_0 = arith.constant 0 : index
    %0 = vector.load %arg1[%c0, %c0_0] : memref<8x48xf32, #tpu.memory_space<vmem>>, vector<8x48xf32>
    %c0_1 = arith.constant 0 : index
    %c0_2 = arith.constant 0 : index
    %1 = vector.load %arg2[%c0_1, %c0_2] : memref<48x416xf32, #tpu.memory_space<vmem>>, vector<48x416xf32>
    %cst = arith.constant dense<0.000000e+00> : vector<8x416xf32>
    %2 = tpu.matmul %0, %1, %cst {dimension_numbers = #tpu.dot_dimension_numbers<[1], [0], [0], [1], [0, 0, 1, 1], [], []>} : vector<8x48xf32>, vector<48x416xf32>, vector<8x416xf32> -> vector<8x416xf32>
    %c0_3 = arith.constant 0 : index
    %c0_4 = arith.constant 0 : index
    %3 = vector.load %arg3[%c0_3, %c0_4] : memref<1x416xf32, #tpu.memory_space<vmem>>, vector<1x416xf32>
    %4 = vector.broadcast %3 : vector<1x416xf32> to vector<8x416xf32>
    %5 = arith.addf %2, %4 : vector<8x416xf32>
    %cst_5 = arith.constant 0.000000e+00 : f32
    %6 = vector.broadcast %cst_5 : f32 to vector<8x416xf32>
    %7 = arith.maximumf %5, %6 : vector<8x416xf32>
    %c0_6 = arith.constant 0 : index
    %c0_7 = arith.constant 0 : index
    %8 = vector.load %arg4[%c0_6, %c0_7] : memref<416x320xf32, #tpu.memory_space<vmem>>, vector<416x320xf32>
    %cst_8 = arith.constant dense<0.000000e+00> : vector<8x320xf32>
    %9 = tpu.matmul %7, %8, %cst_8 {dimension_numbers = #tpu.dot_dimension_numbers<[1], [0], [0], [1], [0, 0, 1, 1], [], []>} : vector<8x416xf32>, vector<416x320xf32>, vector<8x320xf32> -> vector<8x320xf32>
    %c0_9 = arith.constant 0 : index
    %c0_10 = arith.constant 0 : index
    %10 = vector.load %arg5[%c0_9, %c0_10] : memref<1x320xf32, #tpu.memory_space<vmem>>, vector<1x320xf32>
    %11 = vector.broadcast %10 : vector<1x320xf32> to vector<8x320xf32>
    %12 = arith.addf %9, %11 : vector<8x320xf32>
    %cst_11 = arith.constant 0.000000e+00 : f32
    %13 = vector.broadcast %cst_11 : f32 to vector<8x320xf32>
    %14 = arith.maximumf %12, %13 : vector<8x320xf32>
    %c0_12 = arith.constant 0 : index
    %c0_13 = arith.constant 0 : index
    %15 = vector.load %arg6[%c0_12, %c0_13] : memref<320x224xf32, #tpu.memory_space<vmem>>, vector<320x224xf32>
    %cst_14 = arith.constant dense<0.000000e+00> : vector<8x224xf32>
    %16 = tpu.matmul %14, %15, %cst_14 {dimension_numbers = #tpu.dot_dimension_numbers<[1], [0], [0], [1], [0, 0, 1, 1], [], []>} : vector<8x320xf32>, vector<320x224xf32>, vector<8x224xf32> -> vector<8x224xf32>
    %c0_15 = arith.constant 0 : index
    %c0_16 = arith.constant 0 : index
    %17 = vector.load %arg7[%c0_15, %c0_16] : memref<1x224xf32, #tpu.memory_space<vmem>>, vector<1x224xf32>
    %18 = vector.broadcast %17 : vector<1x224xf32> to vector<8x224xf32>
    %19 = arith.addf %16, %18 : vector<8x224xf32>
    %cst_17 = arith.constant 0.000000e+00 : f32
    %20 = vector.broadcast %cst_17 : f32 to vector<8x224xf32>
    %21 = arith.maximumf %19, %20 : vector<8x224xf32>
    %c0_18 = arith.constant 0 : index
    %c0_19 = arith.constant 0 : index
    %22 = vector.load %arg8[%c0_18, %c0_19] : memref<224x44xf32, #tpu.memory_space<vmem>>, vector<224x44xf32>
    %cst_20 = arith.constant dense<0.000000e+00> : vector<8x44xf32>
    %23 = tpu.matmul %21, %22, %cst_20 {dimension_numbers = #tpu.dot_dimension_numbers<[1], [0], [0], [1], [0, 0, 1, 1], [], []>} : vector<8x224xf32>, vector<224x44xf32>, vector<8x44xf32> -> vector<8x44xf32>
    %c0_21 = arith.constant 0 : index
    %c0_22 = arith.constant 0 : index
    %24 = vector.load %arg9[%c0_21, %c0_22] : memref<1x44xf32, #tpu.memory_space<vmem>>, vector<1x44xf32>
    %25 = vector.broadcast %24 : vector<1x44xf32> to vector<8x44xf32>
    %26 = arith.addf %23, %25 : vector<8x44xf32>
    %cst_23 = arith.constant 0.000000e+00 : f32
    %27 = vector.broadcast %cst_23 : f32 to vector<8x44xf32>
    %28 = arith.maximumf %26, %27 : vector<8x44xf32>
    %c0_24 = arith.constant 0 : index
    %c0_25 = arith.constant 0 : index
    %29 = vector.load %arg10[%c0_24, %c0_25] : memref<44x18xf32, #tpu.memory_space<vmem>>, vector<44x18xf32>
    %cst_26 = arith.constant dense<0.000000e+00> : vector<8x18xf32>
    %30 = tpu.matmul %28, %29, %cst_26 {dimension_numbers = #tpu.dot_dimension_numbers<[1], [0], [0], [1], [0, 0, 1, 1], [], []>} : vector<8x44xf32>, vector<44x18xf32>, vector<8x18xf32> -> vector<8x18xf32>
    %c0_27 = arith.constant 0 : index
    %c0_28 = arith.constant 0 : index
    %31 = vector.load %arg11[%c0_27, %c0_28] : memref<1x18xf32, #tpu.memory_space<vmem>>, vector<1x18xf32>
    %32 = vector.broadcast %31 : vector<1x18xf32> to vector<8x18xf32>
    %33 = arith.addf %30, %32 : vector<8x18xf32>
    %cst_29 = arith.constant 0.000000e+00 : f32
    %34 = vector.broadcast %cst_29 : f32 to vector<8x18xf32>
    %35 = arith.maximumf %33, %34 : vector<8x18xf32>
    %c0_30 = arith.constant 0 : index
    %c0_31 = arith.constant 0 : index
    %36 = vector.load %arg12[%c0_30, %c0_31] : memref<18x1xf32, #tpu.memory_space<vmem>>, vector<18x1xf32>
    %cst_32 = arith.constant dense<0.000000e+00> : vector<8x1xf32>
    %37 = tpu.matmul %35, %36, %cst_32 {dimension_numbers = #tpu.dot_dimension_numbers<[1], [0], [0], [1], [0, 0, 1, 1], [], []>} : vector<8x18xf32>, vector<18x1xf32>, vector<8x1xf32> -> vector<8x1xf32>
    %c0_33 = arith.constant 0 : index
    %c0_34 = arith.constant 0 : index
    %38 = vector.load %arg13[%c0_33, %c0_34] : memref<1x1xf32, #tpu.memory_space<vmem>>, vector<1x1xf32>
    %39 = vector.broadcast %38 : vector<1x1xf32> to vector<8x1xf32>
    %40 = arith.addf %37, %39 : vector<8x1xf32>
    %41 = arith.negf %40 : vector<8x1xf32>
    %42 = math.exp %41 : vector<8x1xf32>
    %cst_35 = arith.constant 1.000000e+00 : f32
    %43 = vector.broadcast %cst_35 : f32 to vector<8x1xf32>
    %44 = arith.addf %43, %42 : vector<8x1xf32>
    %45 = arith.divf %43, %44 : vector<8x1xf32>
    %c0_36 = arith.constant 0 : index
    %c0_37 = arith.constant 0 : index
    %46 = vector.load %arg14[%c0_36, %c0_37] : memref<8x1xf32, #tpu.memory_space<vmem>>, vector<8x1xf32>
    tpu.vector_store %arg14[%c0_36, %c0_37], %45 {strides = array<i32>} : memref<8x1xf32, #tpu.memory_space<vmem>>, vector<8x1xf32>,
    return
  }
  func.func @transform_0(%arg0: i32) -> (i32, i32) {
    %c0_i32 = arith.constant 0 : i32
    %c0_i32_0 = arith.constant 0 : i32
    return %arg0, %c0_i32 : i32, i32
  }
  func.func @transform_1(%arg0: i32) -> (i32, i32) {
    %c0_i32 = arith.constant 0 : i32
    %c0_i32_0 = arith.constant 0 : i32
    %c0_i32_1 = arith.constant 0 : i32
    return %c0_i32, %c0_i32_0 : i32, i32
  }
  func.func @transform_2(%arg0: i32) -> (i32, i32) {
    %c0_i32 = arith.constant 0 : i32
    %c0_i32_0 = arith.constant 0 : i32
    %c0_i32_1 = arith.constant 0 : i32
    return %c0_i32, %c0_i32_0 : i32, i32
  }
  func.func @transform_3(%arg0: i32) -> (i32, i32) {
    %c0_i32 = arith.constant 0 : i32
    %c0_i32_0 = arith.constant 0 : i32
    %c0_i32_1 = arith.constant 0 : i32
    return %c0_i32, %c0_i32_0 : i32, i32
  }
  func.func @transform_4(%arg0: i32) -> (i32, i32) {
    %c0_i32 = arith.constant 0 : i32
    %c0_i32_0 = arith.constant 0 : i32
    %c0_i32_1 = arith.constant 0 : i32
    return %c0_i32, %c0_i32_0 : i32, i32
  }
  func.func @transform_5(%arg0: i32) -> (i32, i32) {
    %c0_i32 = arith.constant 0 : i32
    %c0_i32_0 = arith.constant 0 : i32
    %c0_i32_1 = arith.constant 0 : i32
    return %c0_i32, %c0_i32_0 : i32, i32
  }
  func.func @transform_6(%arg0: i32) -> (i32, i32) {
    %c0_i32 = arith.constant 0 : i32
    %c0_i32_0 = arith.constant 0 : i32
    %c0_i32_1 = arith.constant 0 : i32
    return %c0_i32, %c0_i32_0 : i32, i32
  }
  func.func @transform_7(%arg0: i32) -> (i32, i32) {
    %c0_i32 = arith.constant 0 : i32
    %c0_i32_0 = arith.constant 0 : i32
    %c0_i32_1 = arith.constant 0 : i32
    return %c0_i32, %c0_i32_0 : i32, i32
  }
  func.func @transform_8(%arg0: i32) -> (i32, i32) {
    %c0_i32 = arith.constant 0 : i32
    %c0_i32_0 = arith.constant 0 : i32
    %c0_i32_1 = arith.constant 0 : i32
    return %c0_i32, %c0_i32_0 : i32, i32
  }
  func.func @transform_9(%arg0: i32) -> (i32, i32) {
    %c0_i32 = arith.constant 0 : i32
    %c0_i32_0 = arith.constant 0 : i32
    %c0_i32_1 = arith.constant 0 : i32
    return %c0_i32, %c0_i32_0 : i32, i32
  }
  func.func @transform_10(%arg0: i32) -> (i32, i32) {
    %c0_i32 = arith.constant 0 : i32
    %c0_i32_0 = arith.constant 0 : i32
    %c0_i32_1 = arith.constant 0 : i32
    return %c0_i32, %c0_i32_0 : i32, i32
  }
  func.func @transform_11(%arg0: i32) -> (i32, i32) {
    %c0_i32 = arith.constant 0 : i32
    %c0_i32_0 = arith.constant 0 : i32
    %c0_i32_1 = arith.constant 0 : i32
    return %c0_i32, %c0_i32_0 : i32, i32
  }
  func.func @transform_12(%arg0: i32) -> (i32, i32) {
    %c0_i32 = arith.constant 0 : i32
    %c0_i32_0 = arith.constant 0 : i32
    %c0_i32_1 = arith.constant 0 : i32
    return %c0_i32, %c0_i32_0 : i32, i32
  }
  func.func @transform_13(%arg0: i32) -> (i32, i32) {
    %c0_i32 = arith.constant 0 : i32
    %c0_i32_0 = arith.constant 0 : i32
    return %arg0, %c0_i32 : i32, i32
  }
}

</mosaic_0001>

<llo_original>
// kernel: tpu_custom_call.1
$region0: #{tpu_custom_call.1}
  #allocation0 [shape = 'u32[]', space=smem, size = 0x4, offset = 0x4, fixed_abs, tag = 'smem constant byte address 0x4 - core index']
  #allocation1 [shape = 'u32[144,128]{1,0:T(1,128)}', space=vmem, size = 0x12000, scoped, tag = 'internal scratch']
  #allocation2 [shape = 'f32[1,1]{1,0:T(1,128)S(1)}', space=vmem, size = 0x200, scoped, tag = 'scoped memory for tpu_custom_call.1']
  %s0 = inlined_call_operand.vmem [shape: f32[8,48], index: 0, kind: input, shape index: {}]
  %s1 = inlined_call_operand.vmem [shape: f32[48,416], index: 1, kind: input, shape index: {}]
  %s2 = inlined_call_operand.vmem [shape: f32[1,416], index: 2, kind: input, shape index: {}]
  %s3 = inlined_call_operand.hbm [shape: f32[416,320], index: 3, kind: input, shape index: {}]
  %s4 = inlined_call_operand.vmem [shape: f32[1,320], index: 4, kind: input, shape index: {}]
  %s5 = inlined_call_operand.hbm [shape: f32[320,224], index: 5, kind: input, shape index: {}]
  %s6 = inlined_call_operand.vmem [shape: f32[1,224], index: 6, kind: input, shape index: {}]
  %s7 = inlined_call_operand.vmem [shape: f32[224,44], index: 7, kind: input, shape index: {}]
  %s8 = inlined_call_operand.vmem [shape: f32[1,44], index: 8, kind: input, shape index: {}]
  %s9 = inlined_call_operand.vmem [shape: f32[44,18], index: 9, kind: input, shape index: {}]
  %s10 = inlined_call_operand.vmem [shape: f32[1,18], index: 10, kind: input, shape index: {}]
  %s11 = inlined_call_operand.vmem [shape: f32[18,1], index: 11, kind: input, shape index: {}]
  %s12 = inlined_call_operand.<no memory space> [shape: f32[1,1], index: 12, kind: input, shape index: {}]
  %s13 = inlined_call_operand.vmem [shape: f32[8,1], index: 13, kind: output, shape index: {}]
  %s14 = sld [smem:[#allocation0]]
  $region70: #{tpu_custom_call.1} parent=0
    _
  %s16 = ssub.s32 1, %s14
  %s17 = scalar_select 0, %s16, %s14
  %v18 = vstv %s12
  %19 = vst [vmem:[#allocation2] sm:$0x1] %v18
  $region1: #{tpu_custom_call.1} parent=0
    #allocation3 [shape = 'u8[638976]{0}', space=vmem, size = 0x9c000, scoped, tag = 'input window, operand 3, single buffered']
    #allocation4 [shape = 's32[1]{0}', space=sflag, size = 0x4, scoped, tag = 'scoped memory for tpu_custom_call.1']
    #allocation5 [shape = 'u8[327680]{0}', space=vmem, size = 0x50000, scoped, tag = 'input window, operand 5, single buffered']
    #allocation6 [shape = 's32[1]{0}', space=sflag, size = 0x4, scoped, tag = 'scoped memory for tpu_custom_call.1']
    %20 = vsyncpa [#allocation4], 0
    %21 = vsyncpa [#allocation6], 0
    // Predicated region
    $region2: #{tpu_custom_call.1} parent=1 // pred_check
      _
    $region3: #{tpu_custom_call.1} parent=1 // pred_check_branch
      %23 = sbr.rel (0) target = $region5
    $region4: #{tpu_custom_call.1} parent=1 // pred_region
      _
    $region5: #{tpu_custom_call.1} parent=1 // pred_fallthru
      _
    // Predicated region
    $region6: #{tpu_custom_call.1} parent=1 // pred_check
      _
    $region7: #{tpu_custom_call.1} parent=1 // pred_check_branch
      %25 = sbr.rel (0) target = $region9
    $region8: #{tpu_custom_call.1} parent=1 // pred_region
      _
    $region9: #{tpu_custom_call.1} parent=1 // pred_fallthru
      _
    // Predicated region
    $region10: #{tpu_custom_call.1} parent=1 // pred_check
      _
    $region11: #{tpu_custom_call.1} parent=1 // pred_check_branch
      %27 = sbr.rel (0) target = $region13
    $region12: #{tpu_custom_call.1} parent=1 // pred_region
      _
    $region13: #{tpu_custom_call.1} parent=1 // pred_fallthru
      _
    // Predicated region
    $region14: #{tpu_custom_call.1} parent=1 // pred_check
      _
    $region15: #{tpu_custom_call.1} parent=1 // pred_check_branch
      %29 = sbr.rel (0) target = $region17
    $region16: #{tpu_custom_call.1} parent=1 // pred_region
      %s31 = ssub.s32 19968, 19968
      %32 = vsyncadd [#allocation4], %s31
      %s33 = sshll.u32 [#allocation3], 4
      %s34 = int_to_ptr.vmem [resolvable:$true] %s33
      %39 = dma.hbm_to_vmem [thread:$0]  %s3, 19968, %s34, [#allocation4], 384, 384, 24
    $region17: #{tpu_custom_call.1} parent=1 // pred_fallthru
      _
    // Predicated region
    $region18: #{tpu_custom_call.1} parent=1 // pred_check
      _
    $region19: #{tpu_custom_call.1} parent=1 // pred_check_branch
      %41 = sbr.rel (0) target = $region21
    $region20: #{tpu_custom_call.1} parent=1 // pred_region
      _
    $region21: #{tpu_custom_call.1} parent=1 // pred_fallthru
      _
    // Predicated region
    $region22: #{tpu_custom_call.1} parent=1 // pred_check
      _
    $region23: #{tpu_custom_call.1} parent=1 // pred_check_branch
      %43 = sbr.rel (0) target = $region25
    $region24: #{tpu_custom_call.1} parent=1 // pred_region
      %s45 = ssub.s32 10240, 10240
      %46 = vsyncadd [#allocation6], %s45
      %s47 = sshll.u32 [#allocation5], 4
      %s48 = int_to_ptr.vmem [resolvable:$true] %s47
      %53 = dma.hbm_to_vmem [thread:$0]  %s5, 10240, %s48, [#allocation6], 256, 256, 16
    $region25: #{tpu_custom_call.1} parent=1 // pred_fallthru
      _
    // Predicated region
    $region26: #{tpu_custom_call.1} parent=1 // pred_check
      _
    $region27: #{tpu_custom_call.1} parent=1 // pred_check_branch
      %55 = sbr.rel (0) target = $region29
    $region28: #{tpu_custom_call.1} parent=1 // pred_region
      _
    $region29: #{tpu_custom_call.1} parent=1 // pred_fallthru
      _
    // Predicated region
    $region30: #{tpu_custom_call.1} parent=1 // pred_check
      _
    $region31: #{tpu_custom_call.1} parent=1 // pred_check_branch
      %57 = sbr.rel (0) target = $region33
    $region32: #{tpu_custom_call.1} parent=1 // pred_region
      _
    $region33: #{tpu_custom_call.1} parent=1 // pred_fallthru
      _
    // Predicated region
    $region34: #{tpu_custom_call.1} parent=1 // pred_check
      _
    $region35: #{tpu_custom_call.1} parent=1 // pred_check_branch
      %59 = sbr.rel (0) target = $region37
    $region36: #{tpu_custom_call.1} parent=1 // pred_region
      _
    $region37: #{tpu_custom_call.1} parent=1 // pred_fallthru
      _
    // Predicated region
    $region38: #{tpu_custom_call.1} parent=1 // pred_check
      _
    $region39: #{tpu_custom_call.1} parent=1 // pred_check_branch
      %61 = sbr.rel (0) target = $region41
    $region40: #{tpu_custom_call.1} parent=1 // pred_region
      _
    $region41: #{tpu_custom_call.1} parent=1 // pred_fallthru
      _
    // Predicated region
    $region42: #{tpu_custom_call.1} parent=1 // pred_check
      _
    $region43: #{tpu_custom_call.1} parent=1 // pred_check_branch
      %63 = sbr.rel (0) target = $region45
    $region44: #{tpu_custom_call.1} parent=1 // pred_region
      _
    $region45: #{tpu_custom_call.1} parent=1 // pred_fallthru
      _
    // Predicated region
    $region46: #{tpu_custom_call.1} parent=1 // pred_check
      _
    $region47: #{tpu_custom_call.1} parent=1 // pred_check_branch
      %65 = sbr.rel (0) target = $region49
    $region48: #{tpu_custom_call.1} parent=1 // pred_region
      _
    $region49: #{tpu_custom_call.1} parent=1 // pred_fallthru
      _
    // Predicated region
    $region50: #{tpu_custom_call.1} parent=1 // pred_check
      _
    $region51: #{tpu_custom_call.1} parent=1 // pred_check_branch
      %67 = sbr.rel (0) target = $region53
    $region52: #{tpu_custom_call.1} parent=1 // pred_region
      _
    $region53: #{tpu_custom_call.1} parent=1 // pred_fallthru
      _
    // Predicated region
    $region54: #{tpu_custom_call.1} parent=1 // pred_check
      _
    $region55: #{tpu_custom_call.1} parent=1 // pred_check_branch
      %69 = sbr.rel (0) target = $region57
    $region56: #{tpu_custom_call.1} parent=1 // pred_region
      %70 = dma.done [#allocation4], 19968
    $region57: #{tpu_custom_call.1} parent=1 // pred_fallthru
      _
    // Predicated region
    $region58: #{tpu_custom_call.1} parent=1 // pred_check
      _
    $region59: #{tpu_custom_call.1} parent=1 // pred_check_branch
      %72 = sbr.rel (0) target = $region61
    $region60: #{tpu_custom_call.1} parent=1 // pred_region
      %73 = dma.done [#allocation6], 10240
    $region61: #{tpu_custom_call.1} parent=1 // pred_fallthru
      _
    %v74 = vld [vmem:[%s0] sm:$0xff]
    %v75 = vld [vmem:[%s1] sm:$0xff]
    %v76 = vld [vmem:[%s1 + $0x8] sm:$0xff]
    %v77 = vld [vmem:[%s1 + $0x10] sm:$0xff]
    %v78 = vld [vmem:[%s1 + $0x18] sm:$0xff]
    %v79 = vld [vmem:[%s1 + $0x20] sm:$0xff]
    %v80 = vld [vmem:[%s1 + $0x28] sm:$0xff]
    %v81 = vld [vmem:[%s1 + $0x30] sm:$0xff]
    %v82 = vld [vmem:[%s1 + $0x38] sm:$0xff]
    %v83 = vld [vmem:[%s1 + $0x40] sm:$0xff]
    %v84 = vld [vmem:[%s1 + $0x48] sm:$0xff]
    %v85 = vld [vmem:[%s1 + $0x50] sm:$0xff]
    %v86 = vld [vmem:[%s1 + $0x58] sm:$0xff]
    %v87 = vld [vmem:[%s1 + $0x60] sm:$0xff]
    %v88 = vld [vmem:[%s1 + $0x68] sm:$0xff]
    %v89 = vld [vmem:[%s1 + $0x70] sm:$0xff]
    %v90 = vld [vmem:[%s1 + $0x78] sm:$0xff]
    %v91 = vld [vmem:[%s1 + $0x80] sm:$0xff]
    %v92 = vld [vmem:[%s1 + $0x88] sm:$0xff]
    %v93 = vld [vmem:[%s1 + $0x90] sm:$0xff]
    %v94 = vld [vmem:[%s1 + $0x98] sm:$0xff]
    %v95 = vld [vmem:[%s1 + $0xa0] sm:$0xff]
    %v96 = vld [vmem:[%s1 + $0xa8] sm:$0xff]
    %v97 = vld [vmem:[%s1 + $0xb0] sm:$0xff]
    %v98 = vld [vmem:[%s1 + $0xb8] sm:$0xff]
    %v99 = vld [vmem:[%s2] sm:$0xf]
    %v101 = vlaneseq
    %v102 = vshrl.u32 %v101, 7
    %v103 = vsub.s32 0, %v102
    %v104 = vrot.slane %v99, %v103
    %v105 = vlaneseq
    %v106 = vshrl.u32 %v105, 7
    %v107 = vsub.s32 1, %v106
    %v108 = vrot.slane %v99, %v107
    %v109 = vlaneseq
    %v110 = vshrl.u32 %v109, 7
    %v111 = vsub.s32 2, %v110
    %v112 = vrot.slane %v99, %v111
    %v113 = vlaneseq
    %v114 = vshrl.u32 %v113, 7
    %v115 = vsub.s32 3, %v114
    %v116 = vrot.slane %v99, %v115
    %vm121 = vcmask 392192
    %v123 = vsel %vm121, %v74, 0
    %125 = vmatprep.subr.mxu0 %v76
    %126 = vmatpush1.msra.mxu0 %v75
    %127 = vmatprep.subr.mxu0 %v80
    %128 = vmatpush1.msra.mxu0 %v79
    %129 = vmatprep.subr.mxu0 %v84
    %130 = vmatpush1.msra.mxu0 %v83
    %131 = vmatprep.subr.mxu0 %v88
    %132 = vmatpush1.msra.mxu0 %v87
    %133 = vmatprep.subr.mxu0 %v92
    %134 = vmatpush1.msra.mxu0 %v91
    %135 = vmatprep.subr.mxu0 %v96
    %136 = vmatpush1.msra.mxu0 %v95
    %137 = vmatprep.subr.mxu0 0.0
    %138 = vmatpush1.msra.mxu0 0.0
    %139 = vmatprep.subr.mxu0 0.0
    %140 = vmatpush1.msra.mxu0 0.0
    %141 = vmatprep.subr.mxu0 0.0
    %142 = vmatpush1.msra.mxu0 0.0
    %143 = vmatprep.subr.mxu0 0.0
    %144 = vmatpush1.msra.mxu0 0.0
    %145 = vmatprep.subr.mxu0 0.0
    %146 = vmatpush1.msra.mxu0 0.0
    %147 = vmatprep.subr.mxu0 0.0
    %148 = vmatpush1.msra.mxu0 0.0
    %149 = vmatprep.subr.mxu0 0.0
    %150 = vmatpush1.msra.mxu0 0.0
    %151 = vmatprep.subr.mxu0 0.0
    %152 = vmatpush1.msra.mxu0 0.0
    %153 = vmatprep.subr.mxu0 0.0
    %154 = vmatpush1.msra.mxu0 0.0
    %155 = vmatprep.subr.mxu0 0.0
    %156 = vmatpush1.msra.mxu0 0.0
    %157 = vmatprep.subr.mxu0 0.0
    %158 = vmatpush1.msra.mxu0 0.0
    %159 = vmatprep.subr.mxu0 0.0
    %160 = vmatpush1.msra.mxu0 0.0
    %161 = vmatprep.subr.mxu0 0.0
    %162 = vmatpush1.msra.mxu0 0.0
    %163 = vmatprep.subr.mxu0 0.0
    %164 = vmatpush1.msra.mxu0 0.0
    %165 = vmatprep.subr.mxu0 0.0
    %166 = vmatpush1.msra.mxu0 0.0
    %167 = vmatprep.subr.mxu0 0.0
    %168 = vmatpush1.msra.mxu0 0.0
    %169 = vmatprep.subr.mxu0 0.0
    %170 = vmatpush1.msra.mxu0 0.0
    %171 = vmatprep.subr.mxu0 0.0
    %172 = vmatpush1.msra.mxu0 0.0
    %173 = vmatprep.subr.mxu0 0.0
    %174 = vmatpush1.msra.mxu0 0.0
    %175 = vmatprep.subr.mxu0 0.0
    %176 = vmatpush1.msra.mxu0 0.0
    %177 = vmatprep.subr.mxu0 0.0
    %178 = vmatpush1.msra.mxu0 0.0
    %179 = vmatprep.subr.mxu0 0.0
    %180 = vmatpush1.msra.mxu0 0.0
    %181 = vmatprep.subr.mxu0 0.0
    %182 = vmatpush1.msra.mxu0 0.0
    %183 = vmatprep.subr.mxu0 0.0
    %184 = vmatpush1.msra.mxu0 0.0
    %185 = vmatprep.subr.mxu0 0.0
    %186 = vmatpush1.msra.mxu0 0.0
    %187 = vmatprep.subr.mxu0 0.0
    %188 = vmatpush1.msra.mxu0 0.0
    %189 = vmatprep.mubr.f32.mxu0 0.0
    %190 = vmatmul.mubr.f32.gmra.mrb[0].mxu0 %v123
    %v191 = vpop.f32.mrb[0].mxu0
    %v192 = vadd.f32 %v104, %v191
    %v193 = vpop.f32.mrb[0].mxu0
    %v194 = vadd.f32 %v108, %v193
    %195 = vdwg.mxu0
    %196 = vmatprep.subr.mxu0 %v78
    %197 = vmatpush1.msra.mxu0 %v77
    %198 = vmatprep.subr.mxu0 %v82
    %199 = vmatpush1.msra.mxu0 %v81
    %200 = vmatprep.subr.mxu0 %v86
    %201 = vmatpush1.msra.mxu0 %v85
    %202 = vmatprep.subr.mxu0 %v90
    %203 = vmatpush1.msra.mxu0 %v89
    %204 = vmatprep.subr.mxu0 %v94
    %205 = vmatpush1.msra.mxu0 %v93
    %206 = vmatprep.subr.mxu0 %v98
    %207 = vmatpush1.msra.mxu0 %v97
    %208 = vmatprep.subr.mxu0 0.0
    %209 = vmatpush1.msra.mxu0 0.0
    %210 = vmatprep.subr.mxu0 0.0
    %211 = vmatpush1.msra.mxu0 0.0
    %212 = vmatprep.subr.mxu0 0.0
    %213 = vmatpush1.msra.mxu0 0.0
    %214 = vmatprep.subr.mxu0 0.0
    %215 = vmatpush1.msra.mxu0 0.0
    %216 = vmatprep.subr.mxu0 0.0
    %217 = vmatpush1.msra.mxu0 0.0
    %218 = vmatprep.subr.mxu0 0.0
    %219 = vmatpush1.msra.mxu0 0.0
    %220 = vmatprep.subr.mxu0 0.0
    %221 = vmatpush1.msra.mxu0 0.0
    %222 = vmatprep.subr.mxu0 0.0
    %223 = vmatpush1.msra.mxu0 0.0
    %224 = vmatprep.subr.mxu0 0.0
    %225 = vmatpush1.msra.mxu0 0.0
    %226 = vmatprep.subr.mxu0 0.0
    %227 = vmatpush1.msra.mxu0 0.0
    %228 = vmatprep.subr.mxu0 0.0
    %229 = vmatpush1.msra.mxu0 0.0
    %230 = vmatprep.subr.mxu0 0.0
    %231 = vmatpush1.msra.mxu0 0.0
    %232 = vmatprep.subr.mxu0 0.0
    %233 = vmatpush1.msra.mxu0 0.0
    %234 = vmatprep.subr.mxu0 0.0
    %235 = vmatpush1.msra.mxu0 0.0
    %236 = vmatprep.subr.mxu0 0.0
    %237 = vmatpush1.msra.mxu0 0.0
    %238 = vmatprep.subr.mxu0 0.0
    %239 = vmatpush1.msra.mxu0 0.0
    %240 = vmatprep.subr.mxu0 0.0
    %241 = vmatpush1.msra.mxu0 0.0
    %242 = vmatprep.subr.mxu0 0.0
    %243 = vmatpush1.msra.mxu0 0.0
    %244 = vmatprep.subr.mxu0 0.0
    %245 = vmatpush1.msra.mxu0 0.0
    %246 = vmatprep.subr.mxu0 0.0
    %247 = vmatpush1.msra.mxu0 0.0
    %248 = vmatprep.subr.mxu0 0.0
    %249 = vmatpush1.msra.mxu0 0.0
    %250 = vmatprep.subr.mxu0 0.0
    %251 = vmatpush1.msra.mxu0 0.0
    %252 = vmatprep.subr.mxu0 0.0
    %253 = vmatpush1.msra.mxu0 0.0
    %254 = vmatprep.subr.mxu0 0.0
    %255 = vmatpush1.msra.mxu0 0.0
    %256 = vmatprep.subr.mxu0 0.0
    %257 = vmatpush1.msra.mxu0 0.0
    %258 = vmatprep.subr.mxu0 0.0
    %259 = vmatpush1.msra.mxu0 0.0
    %260 = vmatprep.mubr.f32.mxu0 0.0
    %261 = vmatmul.mubr.f32.gmra.mrb[0].mxu0 %v123
    %v262 = vpop.f32.mrb[0].mxu0
    %v263 = vadd.f32 %v112, %v262
    %v264 = vpop.f32.mrb[0].mxu0
    %v265 = vadd.f32 %v116, %v264
    %266 = vdwg.mxu0
    %v267 = vmax.f32 %v192, 0.0
    %v268 = vmax.f32 %v194, 0.0
    %v269 = vmax.f32 %v263, 0.0
    %v270 = vmax.f32 %v265, 0.0
    %v271 = vld [vmem:[#allocation3] sm:$0xff]
    %v272 = vld [vmem:[#allocation3 + $0x8] sm:$0xff]
    %v273 = vld [vmem:[#allocation3 + $0x10] sm:$0xff]
    %v274 = vld [vmem:[#allocation3 + $0x18] sm:$0xff]
    %v275 = vld [vmem:[#allocation3 + $0x20] sm:$0xff]
    %v276 = vld [vmem:[#allocation3 + $0x28] sm:$0xff]
    %v277 = vld [vmem:[#allocation3 + $0x30] sm:$0xff]
    %v278 = vld [vmem:[#allocation3 + $0x38] sm:$0xff]
    %v279 = vld [vmem:[#allocation3 + $0x40] sm:$0xff]
    %v280 = vld [vmem:[#allocation3 + $0x48] sm:$0xff]
    %v281 = vld [vmem:[#allocation3 + $0x50] sm:$0xff]
    %v282 = vld [vmem:[#allocation3 + $0x58] sm:$0xff]
    %v283 = vld [vmem:[#allocation3 + $0x60] sm:$0xff]
    %v284 = vld [vmem:[#allocation3 + $0x68] sm:$0xff]
    %v285 = vld [vmem:[#allocation3 + $0x70] sm:$0xff]
    %v286 = vld [vmem:[#allocation3 + $0x78] sm:$0xff]
    %v287 = vld [vmem:[#allocation3 + $0x80] sm:$0xff]
    %v288 = vld [vmem:[#allocation3 + $0x88] sm:$0xff]
    %v289 = vld [vmem:[#allocation3 + $0x90] sm:$0xff]
    %v290 = vld [vmem:[#allocation3 + $0x98] sm:$0xff]
    %v291 = vld [vmem:[#allocation3 + $0xa0] sm:$0xff]
    %v292 = vld [vmem:[#allocation3 + $0xa8] sm:$0xff]
    %v293 = vld [vmem:[#allocation3 + $0xb0] sm:$0xff]
    %v294 = vld [vmem:[#allocation3 + $0xb8] sm:$0xff]
    %v295 = vld [vmem:[#allocation3 + $0xc0] sm:$0xff]
    %v296 = vld [vmem:[#allocation3 + $0xc8] sm:$0xff]
    %v297 = vld [vmem:[#allocation3 + $0xd0] sm:$0xff]
    %v298 = vld [vmem:[#allocation3 + $0xd8] sm:$0xff]
    %v299 = vld [vmem:[#allocation3 + $0xe0] sm:$0xff]
    %v300 = vld [vmem:[#allocation3 + $0xe8] sm:$0xff]
    %v301 = vld [vmem:[#allocation3 + $0xf0] sm:$0xff]
    %v302 = vld [vmem:[#allocation3 + $0xf8] sm:$0xff]
    %v303 = vld [vmem:[#allocation3 + $0x100] sm:$0xff]
    %v304 = vld [vmem:[#allocation3 + $0x108] sm:$0xff]
    %v305 = vld [vmem:[#allocation3 + $0x110] sm:$0xff]
    %v306 = vld [vmem:[#allocation3 + $0x118] sm:$0xff]
    %v307 = vld [vmem:[#allocation3 + $0x120] sm:$0xff]
    %v308 = vld [vmem:[#allocation3 + $0x128] sm:$0xff]
    %v309 = vld [vmem:[#allocation3 + $0x130] sm:$0xff]
    %v310 = vld [vmem:[#allocation3 + $0x138] sm:$0xff]
    %v311 = vld [vmem:[#allocation3 + $0x140] sm:$0xff]
    %v312 = vld [vmem:[#allocation3 + $0x148] sm:$0xff]
    %v313 = vld [vmem:[#allocation3 + $0x150] sm:$0xff]
    %v314 = vld [vmem:[#allocation3 + $0x158] sm:$0xff]
    %v315 = vld [vmem:[#allocation3 + $0x160] sm:$0xff]
    %v316 = vld [vmem:[#allocation3 + $0x168] sm:$0xff]
    %v317 = vld [vmem:[#allocation3 + $0x170] sm:$0xff]
    %v318 = vld [vmem:[#allocation3 + $0x178] sm:$0xff]
    %v319 = vld [vmem:[#allocation3 + $0x180] sm:$0xff]
    %v320 = vld [vmem:[#allocation3 + $0x188] sm:$0xff]
    %v321 = vld [vmem:[#allocation3 + $0x190] sm:$0xff]
    %v322 = vld [vmem:[#allocation3 + $0x198] sm:$0xff]
    %v323 = vld [vmem:[#allocation3 + $0x1a0] sm:$0xff]
    %v324 = vld [vmem:[#allocation3 + $0x1a8] sm:$0xff]
    %v325 = vld [vmem:[#allocation3 + $0x1b0] sm:$0xff]
    %v326 = vld [vmem:[#allocation3 + $0x1b8] sm:$0xff]
    %v327 = vld [vmem:[#allocation3 + $0x1c0] sm:$0xff]
    %v328 = vld [vmem:[#allocation3 + $0x1c8] sm:$0xff]
    %v329 = vld [vmem:[#allocation3 + $0x1d0] sm:$0xff]
    %v330 = vld [vmem:[#allocation3 + $0x1d8] sm:$0xff]
    %v331 = vld [vmem:[#allocation3 + $0x1e0] sm:$0xff]
    %v332 = vld [vmem:[#allocation3 + $0x1e8] sm:$0xff]
    %v333 = vld [vmem:[#allocation3 + $0x1f0] sm:$0xff]
    %v334 = vld [vmem:[#allocation3 + $0x1f8] sm:$0xff]
    %v335 = vld [vmem:[#allocation3 + $0x200] sm:$0xff]
    %v336 = vld [vmem:[#allocation3 + $0x208] sm:$0xff]
    %v337 = vld [vmem:[#allocation3 + $0x210] sm:$0xff]
    %v338 = vld [vmem:[#allocation3 + $0x218] sm:$0xff]
    %v339 = vld [vmem:[#allocation3 + $0x220] sm:$0xff]
    %v340 = vld [vmem:[#allocation3 + $0x228] sm:$0xff]
    %v341 = vld [vmem:[#allocation3 + $0x230] sm:$0xff]
    %v342 = vld [vmem:[#allocation3 + $0x238] sm:$0xff]
    %v343 = vld [vmem:[#allocation3 + $0x240] sm:$0xff]
    %v344 = vld [vmem:[#allocation3 + $0x248] sm:$0xff]
    %v345 = vld [vmem:[#allocation3 + $0x250] sm:$0xff]
    %v346 = vld [vmem:[#allocation3 + $0x258] sm:$0xff]
    %v347 = vld [vmem:[#allocation3 + $0x260] sm:$0xff]
    %v348 = vld [vmem:[#allocation3 + $0x268] sm:$0xff]
    %v349 = vld [vmem:[#allocation3 + $0x270] sm:$0xff]
    %v350 = vld [vmem:[#allocation3 + $0x278] sm:$0xff]
    %v351 = vld [vmem:[#allocation3 + $0x280] sm:$0xff]
    %v352 = vld [vmem:[#allocation3 + $0x288] sm:$0xff]
    %v353 = vld [vmem:[#allocation3 + $0x290] sm:$0xff]
    %v354 = vld [vmem:[#allocation3 + $0x298] sm:$0xff]
    %v355 = vld [vmem:[#allocation3 + $0x2a0] sm:$0xff]
    %v356 = vld [vmem:[#allocation3 + $0x2a8] sm:$0xff]
    %v357 = vld [vmem:[#allocation3 + $0x2b0] sm:$0xff]
    %v358 = vld [vmem:[#allocation3 + $0x2b8] sm:$0xff]
    %v359 = vld [vmem:[#allocation3 + $0x2c0] sm:$0xff]
    %v360 = vld [vmem:[#allocation3 + $0x2c8] sm:$0xff]
    %v361 = vld [vmem:[#allocation3 + $0x2d0] sm:$0xff]
    %v362 = vld [vmem:[#allocation3 + $0x2d8] sm:$0xff]
    %v363 = vld [vmem:[#allocation3 + $0x2e0] sm:$0xff]
    %v364 = vld [vmem:[#allocation3 + $0x2e8] sm:$0xff]
    %v365 = vld [vmem:[#allocation3 + $0x2f0] sm:$0xff]
    %v366 = vld [vmem:[#allocation3 + $0x2f8] sm:$0xff]
    %v367 = vld [vmem:[#allocation3 + $0x300] sm:$0xff]
    %v368 = vld [vmem:[#allocation3 + $0x308] sm:$0xff]
    %v369 = vld [vmem:[#allocation3 + $0x310] sm:$0xff]
    %v370 = vld [vmem:[#allocation3 + $0x318] sm:$0xff]
    %v371 = vld [vmem:[#allocation3 + $0x320] sm:$0xff]
    %v372 = vld [vmem:[#allocation3 + $0x328] sm:$0xff]
    %v373 = vld [vmem:[#allocation3 + $0x330] sm:$0xff]
    %v374 = vld [vmem:[#allocation3 + $0x338] sm:$0xff]
    %v375 = vld [vmem:[#allocation3 + $0x340] sm:$0xff]
    %v376 = vld [vmem:[#allocation3 + $0x348] sm:$0xff]
    %v377 = vld [vmem:[#allocation3 + $0x350] sm:$0xff]
    %v378 = vld [vmem:[#allocation3 + $0x358] sm:$0xff]
    %v379 = vld [vmem:[#allocation3 + $0x360] sm:$0xff]
    %v380 = vld [vmem:[#allocation3 + $0x368] sm:$0xff]
    %v381 = vld [vmem:[#allocation3 + $0x370] sm:$0xff]
    %v382 = vld [vmem:[#allocation3 + $0x378] sm:$0xff]
    %v383 = vld [vmem:[#allocation3 + $0x380] sm:$0xff]
    %v384 = vld [vmem:[#allocation3 + $0x388] sm:$0xff]
    %v385 = vld [vmem:[#allocation3 + $0x390] sm:$0xff]
    %v386 = vld [vmem:[#allocation3 + $0x398] sm:$0xff]
    %v387 = vld [vmem:[#allocation3 + $0x3a0] sm:$0xff]
    %v388 = vld [vmem:[#allocation3 + $0x3a8] sm:$0xff]
    %v389 = vld [vmem:[#allocation3 + $0x3b0] sm:$0xff]
    %v390 = vld [vmem:[#allocation3 + $0x3b8] sm:$0xff]
    %v391 = vld [vmem:[#allocation3 + $0x3c0] sm:$0xff]
    %v392 = vld [vmem:[#allocation3 + $0x3c8] sm:$0xff]
    %v393 = vld [vmem:[#allocation3 + $0x3d0] sm:$0xff]
    %v394 = vld [vmem:[#allocation3 + $0x3d8] sm:$0xff]
    %v395 = vld [vmem:[#allocation3 + $0x3e0] sm:$0xff]
    %v396 = vld [vmem:[#allocation3 + $0x3e8] sm:$0xff]
    %v397 = vld [vmem:[#allocation3 + $0x3f0] sm:$0xff]
    %v398 = vld [vmem:[#allocation3 + $0x3f8] sm:$0xff]
    %v399 = vld [vmem:[#allocation3 + $0x400] sm:$0xff]
    %v400 = vld [vmem:[#allocation3 + $0x408] sm:$0xff]
    %v401 = vld [vmem:[#allocation3 + $0x410] sm:$0xff]
    %v402 = vld [vmem:[#allocation3 + $0x418] sm:$0xff]
    %v403 = vld [vmem:[#allocation3 + $0x420] sm:$0xff]
    %v404 = vld [vmem:[#allocation3 + $0x428] sm:$0xff]
    %v405 = vld [vmem:[#allocation3 + $0x430] sm:$0xff]
    %v406 = vld [vmem:[#allocation3 + $0x438] sm:$0xff]
    %v407 = vld [vmem:[#allocation3 + $0x440] sm:$0xff]
    %v408 = vld [vmem:[#allocation3 + $0x448] sm:$0xff]
    %v409 = vld [vmem:[#allocation3 + $0x450] sm:$0xff]
    %v410 = vld [vmem:[#allocation3 + $0x458] sm:$0xff]
    %v411 = vld [vmem:[#allocation3 + $0x460] sm:$0xff]
    %v412 = vld [vmem:[#allocation3 + $0x468] sm:$0xff]
    %v413 = vld [vmem:[#allocation3 + $0x470] sm:$0xff]
    %v414 = vld [vmem:[#allocation3 + $0x478] sm:$0xff]
    %v415 = vld [vmem:[#allocation3 + $0x480] sm:$0xff]
    %v416 = vld [vmem:[#allocation3 + $0x488] sm:$0xff]
    %v417 = vld [vmem:[#allocation3 + $0x490] sm:$0xff]
    %v418 = vld [vmem:[#allocation3 + $0x498] sm:$0xff]
    %v419 = vld [vmem:[#allocation3 + $0x4a0] sm:$0xff]
    %v420 = vld [vmem:[#allocation3 + $0x4a8] sm:$0xff]
    %v421 = vld [vmem:[#allocation3 + $0x4b0] sm:$0xff]
    %v422 = vld [vmem:[#allocation3 + $0x4b8] sm:$0xff]
    %v423 = vld [vmem:[#allocation3 + $0x4c0] sm:$0xff]
    %v424 = vld [vmem:[#allocation3 + $0x4c8] sm:$0xff]
    %v425 = vld [vmem:[#allocation3 + $0x4d0] sm:$0xff]
    %v426 = vld [vmem:[#allocation3 + $0x4d8] sm:$0xff]
    %v427 = vld [vmem:[%s4] sm:$0x7]
    %v429 = vlaneseq
    %v430 = vshrl.u32 %v429, 7
    %v431 = vsub.s32 0, %v430
    %v432 = vrot.slane %v427, %v431
    %v433 = vlaneseq
    %v434 = vshrl.u32 %v433, 7
    %v435 = vsub.s32 1, %v434
    %v436 = vrot.slane %v427, %v435
    %v437 = vlaneseq
    %v438 = vshrl.u32 %v437, 7
    %v439 = vsub.s32 2, %v438
    %v440 = vrot.slane %v427, %v439
    %vm444 = vcmask 261120
    %v446 = vsel %vm444, %v270, 0
    %448 = vmatprep.subr.mxu0 %v272
    %449 = vmatpush1.msra.mxu0 %v271
    %450 = vmatprep.subr.mxu0 %v275
    %451 = vmatpush1.msra.mxu0 %v274
    %452 = vmatprep.subr.mxu0 %v278
    %453 = vmatpush1.msra.mxu0 %v277
    %454 = vmatprep.subr.mxu0 %v281
    %455 = vmatpush1.msra.mxu0 %v280
    %456 = vmatprep.subr.mxu0 %v284
    %457 = vmatpush1.msra.mxu0 %v283
    %458 = vmatprep.subr.mxu0 %v287
    %459 = vmatpush1.msra.mxu0 %v286
    %460 = vmatprep.subr.mxu0 %v290
    %461 = vmatpush1.msra.mxu0 %v289
    %462 = vmatprep.subr.mxu0 %v293
    %463 = vmatpush1.msra.mxu0 %v292
    %464 = vmatprep.subr.mxu0 %v296
    %465 = vmatpush1.msra.mxu0 %v295
    %466 = vmatprep.subr.mxu0 %v299
    %467 = vmatpush1.msra.mxu0 %v298
    %468 = vmatprep.subr.mxu0 %v302
    %469 = vmatpush1.msra.mxu0 %v301
    %470 = vmatprep.subr.mxu0 %v305
    %471 = vmatpush1.msra.mxu0 %v304
    %472 = vmatprep.subr.mxu0 %v308
    %473 = vmatpush1.msra.mxu0 %v307
    %474 = vmatprep.subr.mxu0 %v311
    %475 = vmatpush1.msra.mxu0 %v310
    %476 = vmatprep.subr.mxu0 %v314
    %477 = vmatpush1.msra.mxu0 %v313
    %478 = vmatprep.subr.mxu0 %v317
    %479 = vmatpush1.msra.mxu0 %v316
    %480 = vmatprep.subr.mxu0 %v320
    %481 = vmatpush1.msra.mxu0 %v319
    %482 = vmatprep.subr.mxu0 %v323
    %483 = vmatpush1.msra.mxu0 %v322
    %484 = vmatprep.subr.mxu0 %v326
    %485 = vmatpush1.msra.mxu0 %v325
    %486 = vmatprep.subr.mxu0 %v329
    %487 = vmatpush1.msra.mxu0 %v328
    %488 = vmatprep.subr.mxu0 %v332
    %489 = vmatpush1.msra.mxu0 %v331
    %490 = vmatprep.subr.mxu0 %v335
    %491 = vmatpush1.msra.mxu0 %v334
    %492 = vmatprep.subr.mxu0 %v338
    %493 = vmatpush1.msra.mxu0 %v337
    %494 = vmatprep.subr.mxu0 %v341
    %495 = vmatpush1.msra.mxu0 %v340
    %496 = vmatprep.subr.mxu0 %v344
    %497 = vmatpush1.msra.mxu0 %v343
    %498 = vmatprep.subr.mxu0 %v347
    %499 = vmatpush1.msra.mxu0 %v346
    %500 = vmatprep.subr.mxu0 %v350
    %501 = vmatpush1.msra.mxu0 %v349
    %502 = vmatprep.subr.mxu0 %v353
    %503 = vmatpush1.msra.mxu0 %v352
    %504 = vmatprep.subr.mxu0 %v356
    %505 = vmatpush1.msra.mxu0 %v355
    %506 = vmatprep.subr.mxu0 %v359
    %507 = vmatpush1.msra.mxu0 %v358
    %508 = vmatprep.subr.mxu0 %v362
    %509 = vmatpush1.msra.mxu0 %v361
    %510 = vmatprep.subr.mxu0 %v365
    %511 = vmatpush1.msra.mxu0 %v364
    %512 = vmatprep.mubr.f32.mxu0 %v268
    %513 = vmatmul.mubr.f32.gmra.mrb[0].mxu0 %v267
    %v514 = vpop.f32.mrb[0].mxu0
    %v515 = vadd.f32 %v432, %v514
    %v516 = vpop.f32.mrb[0].mxu0
    %v517 = vadd.f32 %v436, %v516
    %518 = vdwg.mxu0
    %519 = vmatprep.subr.mxu0 %v368
    %520 = vmatpush1.msra.mxu0 %v367
    %521 = vmatprep.subr.mxu0 %v371
    %522 = vmatpush1.msra.mxu0 %v370
    %523 = vmatprep.subr.mxu0 %v374
    %524 = vmatpush1.msra.mxu0 %v373
    %525 = vmatprep.subr.mxu0 %v377
    %526 = vmatpush1.msra.mxu0 %v376
    %527 = vmatprep.subr.mxu0 %v380
    %528 = vmatpush1.msra.mxu0 %v379
    %529 = vmatprep.subr.mxu0 %v383
    %530 = vmatpush1.msra.mxu0 %v382
    %531 = vmatprep.subr.mxu0 %v386
    %532 = vmatpush1.msra.mxu0 %v385
    %533 = vmatprep.subr.mxu0 %v389
    %534 = vmatpush1.msra.mxu0 %v388
    %535 = vmatprep.subr.mxu0 %v392
    %536 = vmatpush1.msra.mxu0 %v391
    %537 = vmatprep.subr.mxu0 %v395
    %538 = vmatpush1.msra.mxu0 %v394
    %539 = vmatprep.subr.mxu0 %v398
    %540 = vmatpush1.msra.mxu0 %v397
    %541 = vmatprep.subr.mxu0 %v401
    %542 = vmatpush1.msra.mxu0 %v400
    %543 = vmatprep.subr.mxu0 %v404
    %544 = vmatpush1.msra.mxu0 %v403
    %545 = vmatprep.subr.mxu0 %v407
    %546 = vmatpush1.msra.mxu0 %v406
    %547 = vmatprep.subr.mxu0 %v410
    %548 = vmatpush1.msra.mxu0 %v409
    %549 = vmatprep.subr.mxu0 %v413
    %550 = vmatpush1.msra.mxu0 %v412
    %551 = vmatprep.subr.mxu0 %v416
    %552 = vmatpush1.msra.mxu0 %v415
    %553 = vmatprep.subr.mxu0 %v419
    %554 = vmatpush1.msra.mxu0 %v418
    %555 = vmatprep.subr.mxu0 %v422
    %556 = vmatpush1.msra.mxu0 %v421
    %557 = vmatprep.subr.mxu0 %v425
    %558 = vmatpush1.msra.mxu0 %v424
    %559 = vmatprep.subr.mxu0 0.0
    %560 = vmatpush1.msra.mxu0 0.0
    %561 = vmatprep.subr.mxu0 0.0
    %562 = vmatpush1.msra.mxu0 0.0
    %563 = vmatprep.subr.mxu0 0.0
    %564 = vmatpush1.msra.mxu0 0.0
    %565 = vmatprep.subr.mxu0 0.0
    %566 = vmatpush1.msra.mxu0 0.0
    %567 = vmatprep.subr.mxu0 0.0
    %568 = vmatpush1.msra.mxu0 0.0
    %569 = vmatprep.subr.mxu0 0.0
    %570 = vmatpush1.msra.mxu0 0.0
    %571 = vmatprep.subr.mxu0 0.0
    %572 = vmatpush1.msra.mxu0 0.0
    %573 = vmatprep.subr.mxu0 0.0
    %574 = vmatpush1.msra.mxu0 0.0
    %575 = vmatprep.subr.mxu0 0.0
    %576 = vmatpush1.msra.mxu0 0.0
    %577 = vmatprep.subr.mxu0 0.0
    %578 = vmatpush1.msra.mxu0 0.0
    %579 = vmatprep.subr.mxu0 0.0
    %580 = vmatpush1.msra.mxu0 0.0
    %581 = vmatprep.subr.mxu0 0.0
    %582 = vmatpush1.msra.mxu0 0.0
    %583 = vmatprep.mubr.f32.mxu0 %v446
    %584 = vmatmul.mubr.f32.gmra.mrb[0].mxu0 %v269
    %v585 = vpop.f32.mrb[0].mxu0
    %v586 = vadd.f32 %v515, %v585
    %v587 = vpop.f32.mrb[0].mxu0
    %v588 = vadd.f32 %v517, %v587
    %589 = vdwg.mxu0
    %590 = vmatprep.subr.mxu0 0.0
    %591 = vmatpush1.msra.mxu0 %v273
    %592 = vmatprep.subr.mxu0 0.0
    %593 = vmatpush1.msra.mxu0 %v276
    %594 = vmatprep.subr.mxu0 0.0
    %595 = vmatpush1.msra.mxu0 %v279
    %596 = vmatprep.subr.mxu0 0.0
    %597 = vmatpush1.msra.mxu0 %v282
    %598 = vmatprep.subr.mxu0 0.0
    %599 = vmatpush1.msra.mxu0 %v285
    %600 = vmatprep.subr.mxu0 0.0
    %601 = vmatpush1.msra.mxu0 %v288
    %602 = vmatprep.subr.mxu0 0.0
    %603 = vmatpush1.msra.mxu0 %v291
    %604 = vmatprep.subr.mxu0 0.0
    %605 = vmatpush1.msra.mxu0 %v294
    %606 = vmatprep.subr.mxu0 0.0
    %607 = vmatpush1.msra.mxu0 %v297
    %608 = vmatprep.subr.mxu0 0.0
    %609 = vmatpush1.msra.mxu0 %v300
    %610 = vmatprep.subr.mxu0 0.0
    %611 = vmatpush1.msra.mxu0 %v303
    %612 = vmatprep.subr.mxu0 0.0
    %613 = vmatpush1.msra.mxu0 %v306
    %614 = vmatprep.subr.mxu0 0.0
    %615 = vmatpush1.msra.mxu0 %v309
    %616 = vmatprep.subr.mxu0 0.0
    %617 = vmatpush1.msra.mxu0 %v312
    %618 = vmatprep.subr.mxu0 0.0
    %619 = vmatpush1.msra.mxu0 %v315
    %620 = vmatprep.subr.mxu0 0.0
    %621 = vmatpush1.msra.mxu0 %v318
    %622 = vmatprep.subr.mxu0 0.0
    %623 = vmatpush1.msra.mxu0 %v321
    %624 = vmatprep.subr.mxu0 0.0
    %625 = vmatpush1.msra.mxu0 %v324
    %626 = vmatprep.subr.mxu0 0.0
    %627 = vmatpush1.msra.mxu0 %v327
    %628 = vmatprep.subr.mxu0 0.0
    %629 = vmatpush1.msra.mxu0 %v330
    %630 = vmatprep.subr.mxu0 0.0
    %631 = vmatpush1.msra.mxu0 %v333
    %632 = vmatprep.subr.mxu0 0.0
    %633 = vmatpush1.msra.mxu0 %v336
    %634 = vmatprep.subr.mxu0 0.0
    %635 = vmatpush1.msra.mxu0 %v339
    %636 = vmatprep.subr.mxu0 0.0
    %637 = vmatpush1.msra.mxu0 %v342
    %638 = vmatprep.subr.mxu0 0.0
    %639 = vmatpush1.msra.mxu0 %v345
    %640 = vmatprep.subr.mxu0 0.0
    %641 = vmatpush1.msra.mxu0 %v348
    %642 = vmatprep.subr.mxu0 0.0
    %643 = vmatpush1.msra.mxu0 %v351
    %644 = vmatprep.subr.mxu0 0.0
    %645 = vmatpush1.msra.mxu0 %v354
    %646 = vmatprep.subr.mxu0 0.0
    %647 = vmatpush1.msra.mxu0 %v357
    %648 = vmatprep.subr.mxu0 0.0
    %649 = vmatpush1.msra.mxu0 %v360
    %650 = vmatprep.subr.mxu0 0.0
    %651 = vmatpush1.msra.mxu0 %v363
    %652 = vmatprep.subr.mxu0 0.0
    %653 = vmatpush1.msra.mxu0 %v366
    %654 = vmatprep.mubr.f32.mxu0 %v268
    %655 = vmatmul.mubr.f32.gmra.mrb[0].mxu0 %v267
    %v656 = vpop.f32.mrb[0].mxu0
    %v657 = vadd.f32 %v440, %v656
    %v658 = vpop.f32.mrb[0].mxu0
    %659 = vdwg.mxu0
    %660 = vmatprep.subr.mxu0 0.0
    %661 = vmatpush1.msra.mxu0 %v369
    %662 = vmatprep.subr.mxu0 0.0
    %663 = vmatpush1.msra.mxu0 %v372
    %664 = vmatprep.subr.mxu0 0.0
    %665 = vmatpush1.msra.mxu0 %v375
    %666 = vmatprep.subr.mxu0 0.0
    %667 = vmatpush1.msra.mxu0 %v378
    %668 = vmatprep.subr.mxu0 0.0
    %669 = vmatpush1.msra.mxu0 %v381
    %670 = vmatprep.subr.mxu0 0.0
    %671 = vmatpush1.msra.mxu0 %v384
    %672 = vmatprep.subr.mxu0 0.0
    %673 = vmatpush1.msra.mxu0 %v387
    %674 = vmatprep.subr.mxu0 0.0
    %675 = vmatpush1.msra.mxu0 %v390
    %676 = vmatprep.subr.mxu0 0.0
    %677 = vmatpush1.msra.mxu0 %v393
    %678 = vmatprep.subr.mxu0 0.0
    %679 = vmatpush1.msra.mxu0 %v396
    %680 = vmatprep.subr.mxu0 0.0
    %681 = vmatpush1.msra.mxu0 %v399
    %682 = vmatprep.subr.mxu0 0.0
    %683 = vmatpush1.msra.mxu0 %v402
    %684 = vmatprep.subr.mxu0 0.0
    %685 = vmatpush1.msra.mxu0 %v405
    %686 = vmatprep.subr.mxu0 0.0
    %687 = vmatpush1.msra.mxu0 %v408
    %688 = vmatprep.subr.mxu0 0.0
    %689 = vmatpush1.msra.mxu0 %v411
    %690 = vmatprep.subr.mxu0 0.0
    %691 = vmatpush1.msra.mxu0 %v414
    %692 = vmatprep.subr.mxu0 0.0
    %693 = vmatpush1.msra.mxu0 %v417
    %694 = vmatprep.subr.mxu0 0.0
    %695 = vmatpush1.msra.mxu0 %v420
    %696 = vmatprep.subr.mxu0 0.0
    %697 = vmatpush1.msra.mxu0 %v423
    %698 = vmatprep.subr.mxu0 0.0
    %699 = vmatpush1.msra.mxu0 %v426
    %700 = vmatprep.subr.mxu0 0.0
    %701 = vmatpush1.msra.mxu0 0.0
    %702 = vmatprep.subr.mxu0 0.0
    %703 = vmatpush1.msra.mxu0 0.0
    %704 = vmatprep.subr.mxu0 0.0
    %705 = vmatpush1.msra.mxu0 0.0
    %706 = vmatprep.subr.mxu0 0.0
    %707 = vmatpush1.msra.mxu0 0.0
    %708 = vmatprep.subr.mxu0 0.0
    %709 = vmatpush1.msra.mxu0 0.0
    %710 = vmatprep.subr.mxu0 0.0
    %711 = vmatpush1.msra.mxu0 0.0
    %712 = vmatprep.subr.mxu0 0.0
    %713 = vmatpush1.msra.mxu0 0.0
    %714 = vmatprep.subr.mxu0 0.0
    %715 = vmatpush1.msra.mxu0 0.0
    %716 = vmatprep.subr.mxu0 0.0
    %717 = vmatpush1.msra.mxu0 0.0
    %718 = vmatprep.subr.mxu0 0.0
    %719 = vmatpush1.msra.mxu0 0.0
    %720 = vmatprep.subr.mxu0 0.0
    %721 = vmatpush1.msra.mxu0 0.0
    %722 = vmatprep.subr.mxu0 0.0
    %723 = vmatpush1.msra.mxu0 0.0
    %724 = vmatprep.mubr.f32.mxu0 %v446
    %725 = vmatmul.mubr.f32.gmra.mrb[0].mxu0 %v269
    %v726 = vpop.f32.mrb[0].mxu0
    %v727 = vadd.f32 %v657, %v726
    %v728 = vpop.f32.mrb[0].mxu0
    %729 = vdwg.mxu0
    %v730 = vmax.f32 %v586, 0.0
    %v731 = vmax.f32 %v588, 0.0
    %v732 = vmax.f32 %v727, 0.0
    %v733 = vld [vmem:[#allocation5] sm:$0xff]
    %v734 = vld [vmem:[#allocation5 + $0x8] sm:$0xff]
    %v735 = vld [vmem:[#allocation5 + $0x10] sm:$0xff]
    %v736 = vld [vmem:[#allocation5 + $0x18] sm:$0xff]
    %v737 = vld [vmem:[#allocation5 + $0x20] sm:$0xff]
    %v738 = vld [vmem:[#allocation5 + $0x28] sm:$0xff]
    %v739 = vld [vmem:[#allocation5 + $0x30] sm:$0xff]
    %v740 = vld [vmem:[#allocation5 + $0x38] sm:$0xff]
    %v741 = vld [vmem:[#allocation5 + $0x40] sm:$0xff]
    %v742 = vld [vmem:[#allocation5 + $0x48] sm:$0xff]
    %v743 = vld [vmem:[#allocation5 + $0x50] sm:$0xff]
    %v744 = vld [vmem:[#allocation5 + $0x58] sm:$0xff]
    %v745 = vld [vmem:[#allocation5 + $0x60] sm:$0xff]
    %v746 = vld [vmem:[#allocation5 + $0x68] sm:$0xff]
    %v747 = vld [vmem:[#allocation5 + $0x70] sm:$0xff]
    %v748 = vld [vmem:[#allocation5 + $0x78] sm:$0xff]
    %v749 = vld [vmem:[#allocation5 + $0x80] sm:$0xff]
    %v750 = vld [vmem:[#allocation5 + $0x88] sm:$0xff]
    %v751 = vld [vmem:[#allocation5 + $0x90] sm:$0xff]
    %v752 = vld [vmem:[#allocation5 + $0x98] sm:$0xff]
    %v753 = vld [vmem:[#allocation5 + $0xa0] sm:$0xff]
    %v754 = vld [vmem:[#allocation5 + $0xa8] sm:$0xff]
    %v755 = vld [vmem:[#allocation5 + $0xb0] sm:$0xff]
    %v756 = vld [vmem:[#allocation5 + $0xb8] sm:$0xff]
    %v757 = vld [vmem:[#allocation5 + $0xc0] sm:$0xff]
    %v758 = vld [vmem:[#allocation5 + $0xc8] sm:$0xff]
    %v759 = vld [vmem:[#allocation5 + $0xd0] sm:$0xff]
    %v760 = vld [vmem:[#allocation5 + $0xd8] sm:$0xff]
    %v761 = vld [vmem:[#allocation5 + $0xe0] sm:$0xff]
    %v762 = vld [vmem:[#allocation5 + $0xe8] sm:$0xff]
    %v763 = vld [vmem:[#allocation5 + $0xf0] sm:$0xff]
    %v764 = vld [vmem:[#allocation5 + $0xf8] sm:$0xff]
    %v765 = vld [vmem:[#allocation5 + $0x100] sm:$0xff]
    %v766 = vld [vmem:[#allocation5 + $0x108] sm:$0xff]
    %v767 = vld [vmem:[#allocation5 + $0x110] sm:$0xff]
    %v768 = vld [vmem:[#allocation5 + $0x118] sm:$0xff]
    %v769 = vld [vmem:[#allocation5 + $0x120] sm:$0xff]
    %v770 = vld [vmem:[#allocation5 + $0x128] sm:$0xff]
    %v771 = vld [vmem:[#allocation5 + $0x130] sm:$0xff]
    %v772 = vld [vmem:[#allocation5 + $0x138] sm:$0xff]
    %v773 = vld [vmem:[#allocation5 + $0x140] sm:$0xff]
    %v774 = vld [vmem:[#allocation5 + $0x148] sm:$0xff]
    %v775 = vld [vmem:[#allocation5 + $0x150] sm:$0xff]
    %v776 = vld [vmem:[#allocation5 + $0x158] sm:$0xff]
    %v777 = vld [vmem:[#allocation5 + $0x160] sm:$0xff]
    %v778 = vld [vmem:[#allocation5 + $0x168] sm:$0xff]
    %v779 = vld [vmem:[#allocation5 + $0x170] sm:$0xff]
    %v780 = vld [vmem:[#allocation5 + $0x178] sm:$0xff]
    %v781 = vld [vmem:[#allocation5 + $0x180] sm:$0xff]
    %v782 = vld [vmem:[#allocation5 + $0x188] sm:$0xff]
    %v783 = vld [vmem:[#allocation5 + $0x190] sm:$0xff]
    %v784 = vld [vmem:[#allocation5 + $0x198] sm:$0xff]
    %v785 = vld [vmem:[#allocation5 + $0x1a0] sm:$0xff]
    %v786 = vld [vmem:[#allocation5 + $0x1a8] sm:$0xff]
    %v787 = vld [vmem:[#allocation5 + $0x1b0] sm:$0xff]
    %v788 = vld [vmem:[#allocation5 + $0x1b8] sm:$0xff]
    %v789 = vld [vmem:[#allocation5 + $0x1c0] sm:$0xff]
    %v790 = vld [vmem:[#allocation5 + $0x1c8] sm:$0xff]
    %v791 = vld [vmem:[#allocation5 + $0x1d0] sm:$0xff]
    %v792 = vld [vmem:[#allocation5 + $0x1d8] sm:$0xff]
    %v793 = vld [vmem:[#allocation5 + $0x1e0] sm:$0xff]
    %v794 = vld [vmem:[#allocation5 + $0x1e8] sm:$0xff]
    %v795 = vld [vmem:[#allocation5 + $0x1f0] sm:$0xff]
    %v796 = vld [vmem:[#allocation5 + $0x1f8] sm:$0xff]
    %v797 = vld [vmem:[#allocation5 + $0x200] sm:$0xff]
    %v798 = vld [vmem:[#allocation5 + $0x208] sm:$0xff]
    %v799 = vld [vmem:[#allocation5 + $0x210] sm:$0xff]
    %v800 = vld [vmem:[#allocation5 + $0x218] sm:$0xff]
    %v801 = vld [vmem:[#allocation5 + $0x220] sm:$0xff]
    %v802 = vld [vmem:[#allocation5 + $0x228] sm:$0xff]
    %v803 = vld [vmem:[#allocation5 + $0x230] sm:$0xff]
    %v804 = vld [vmem:[#allocation5 + $0x238] sm:$0xff]
    %v805 = vld [vmem:[#allocation5 + $0x240] sm:$0xff]
    %v806 = vld [vmem:[#allocation5 + $0x248] sm:$0xff]
    %v807 = vld [vmem:[#allocation5 + $0x250] sm:$0xff]
    %v808 = vld [vmem:[#allocation5 + $0x258] sm:$0xff]
    %v809 = vld [vmem:[#allocation5 + $0x260] sm:$0xff]
    %v810 = vld [vmem:[#allocation5 + $0x268] sm:$0xff]
    %v811 = vld [vmem:[#allocation5 + $0x270] sm:$0xff]
    %v812 = vld [vmem:[#allocation5 + $0x278] sm:$0xff]
    %v813 = vld [vmem:[%s6] sm:$0x3]
    %v815 = vlaneseq
    %v816 = vshrl.u32 %v815, 7
    %v817 = vsub.s32 0, %v816
    %v818 = vrot.slane %v813, %v817
    %v819 = vlaneseq
    %v820 = vshrl.u32 %v819, 7
    %v821 = vsub.s32 1, %v820
    %v822 = vrot.slane %v813, %v821
    %vm825 = vcmask 523264
    %v827 = vsel %vm825, %v732, 0
    %829 = vmatprep.subr.mxu0 %v734
    %830 = vmatpush1.msra.mxu0 %v733
    %831 = vmatprep.subr.mxu0 %v736
    %832 = vmatpush1.msra.mxu0 %v735
    %833 = vmatprep.subr.mxu0 %v738
    %834 = vmatpush1.msra.mxu0 %v737
    %835 = vmatprep.subr.mxu0 %v740
    %836 = vmatpush1.msra.mxu0 %v739
    %837 = vmatprep.subr.mxu0 %v742
    %838 = vmatpush1.msra.mxu0 %v741
    %839 = vmatprep.subr.mxu0 %v744
    %840 = vmatpush1.msra.mxu0 %v743
    %841 = vmatprep.subr.mxu0 %v746
    %842 = vmatpush1.msra.mxu0 %v745
    %843 = vmatprep.subr.mxu0 %v748
    %844 = vmatpush1.msra.mxu0 %v747
    %845 = vmatprep.subr.mxu0 %v750
    %846 = vmatpush1.msra.mxu0 %v749
    %847 = vmatprep.subr.mxu0 %v752
    %848 = vmatpush1.msra.mxu0 %v751
    %849 = vmatprep.subr.mxu0 %v754
    %850 = vmatpush1.msra.mxu0 %v753
    %851 = vmatprep.subr.mxu0 %v756
    %852 = vmatpush1.msra.mxu0 %v755
    %853 = vmatprep.subr.mxu0 %v758
    %854 = vmatpush1.msra.mxu0 %v757
    %855 = vmatprep.subr.mxu0 %v760
    %856 = vmatpush1.msra.mxu0 %v759
    %857 = vmatprep.subr.mxu0 %v762
    %858 = vmatpush1.msra.mxu0 %v761
    %859 = vmatprep.subr.mxu0 %v764
    %860 = vmatpush1.msra.mxu0 %v763
    %861 = vmatprep.subr.mxu0 %v766
    %862 = vmatpush1.msra.mxu0 %v765
    %863 = vmatprep.subr.mxu0 %v768
    %864 = vmatpush1.msra.mxu0 %v767
    %865 = vmatprep.subr.mxu0 %v770
    %866 = vmatpush1.msra.mxu0 %v769
    %867 = vmatprep.subr.mxu0 %v772
    %868 = vmatpush1.msra.mxu0 %v771
    %869 = vmatprep.subr.mxu0 %v774
    %870 = vmatpush1.msra.mxu0 %v773
    %871 = vmatprep.subr.mxu0 %v776
    %872 = vmatpush1.msra.mxu0 %v775
    %873 = vmatprep.subr.mxu0 %v778
    %874 = vmatpush1.msra.mxu0 %v777
    %875 = vmatprep.subr.mxu0 %v780
    %876 = vmatpush1.msra.mxu0 %v779
    %877 = vmatprep.subr.mxu0 %v782
    %878 = vmatpush1.msra.mxu0 %v781
    %879 = vmatprep.subr.mxu0 %v784
    %880 = vmatpush1.msra.mxu0 %v783
    %881 = vmatprep.subr.mxu0 %v786
    %882 = vmatpush1.msra.mxu0 %v785
    %883 = vmatprep.subr.mxu0 %v788
    %884 = vmatpush1.msra.mxu0 %v787
    %885 = vmatprep.subr.mxu0 %v790
    %886 = vmatpush1.msra.mxu0 %v789
    %887 = vmatprep.subr.mxu0 %v792
    %888 = vmatpush1.msra.mxu0 %v791
    %889 = vmatprep.subr.mxu0 %v794
    %890 = vmatpush1.msra.mxu0 %v793
    %891 = vmatprep.subr.mxu0 %v796
    %892 = vmatpush1.msra.mxu0 %v795
    %893 = vmatprep.mubr.f32.mxu0 %v731
    %894 = vmatmul.mubr.f32.gmra.mrb[0].mxu0 %v730
    %v895 = vpop.f32.mrb[0].mxu0
    %v896 = vadd.f32 %v818, %v895
    %v897 = vpop.f32.mrb[0].mxu0
    %v898 = vadd.f32 %v822, %v897
    %899 = vdwg.mxu0
    %900 = vmatprep.subr.mxu0 %v798
    %901 = vmatpush1.msra.mxu0 %v797
    %902 = vmatprep.subr.mxu0 %v800
    %903 = vmatpush1.msra.mxu0 %v799
    %904 = vmatprep.subr.mxu0 %v802
    %905 = vmatpush1.msra.mxu0 %v801
    %906 = vmatprep.subr.mxu0 %v804
    %907 = vmatpush1.msra.mxu0 %v803
    %908 = vmatprep.subr.mxu0 %v806
    %909 = vmatpush1.msra.mxu0 %v805
    %910 = vmatprep.subr.mxu0 %v808
    %911 = vmatpush1.msra.mxu0 %v807
    %912 = vmatprep.subr.mxu0 %v810
    %913 = vmatpush1.msra.mxu0 %v809
    %914 = vmatprep.subr.mxu0 %v812
    %915 = vmatpush1.msra.mxu0 %v811
    %916 = vmatprep.subr.mxu0 0.0
    %917 = vmatpush1.msra.mxu0 0.0
    %918 = vmatprep.subr.mxu0 0.0
    %919 = vmatpush1.msra.mxu0 0.0
    %920 = vmatprep.subr.mxu0 0.0
    %921 = vmatpush1.msra.mxu0 0.0
    %922 = vmatprep.subr.mxu0 0.0
    %923 = vmatpush1.msra.mxu0 0.0
    %924 = vmatprep.subr.mxu0 0.0
    %925 = vmatpush1.msra.mxu0 0.0
    %926 = vmatprep.subr.mxu0 0.0
    %927 = vmatpush1.msra.mxu0 0.0
    %928 = vmatprep.subr.mxu0 0.0
    %929 = vmatpush1.msra.mxu0 0.0
    %930 = vmatprep.subr.mxu0 0.0
    %931 = vmatpush1.msra.mxu0 0.0
    %932 = vmatprep.subr.mxu0 0.0
    %933 = vmatpush1.msra.mxu0 0.0
    %934 = vmatprep.subr.mxu0 0.0
    %935 = vmatpush1.msra.mxu0 0.0
    %936 = vmatprep.subr.mxu0 0.0
    %937 = vmatpush1.msra.mxu0 0.0
    %938 = vmatprep.subr.mxu0 0.0
    %939 = vmatpush1.msra.mxu0 0.0
    %940 = vmatprep.subr.mxu0 0.0
    %941 = vmatpush1.msra.mxu0 0.0
    %942 = vmatprep.subr.mxu0 0.0
    %943 = vmatpush1.msra.mxu0 0.0
    %944 = vmatprep.subr.mxu0 0.0
    %945 = vmatpush1.msra.mxu0 0.0
    %946 = vmatprep.subr.mxu0 0.0
    %947 = vmatpush1.msra.mxu0 0.0
    %948 = vmatprep.subr.mxu0 0.0
    %949 = vmatpush1.msra.mxu0 0.0
    %950 = vmatprep.subr.mxu0 0.0
    %951 = vmatpush1.msra.mxu0 0.0
    %952 = vmatprep.subr.mxu0 0.0
    %953 = vmatpush1.msra.mxu0 0.0
    %954 = vmatprep.subr.mxu0 0.0
    %955 = vmatpush1.msra.mxu0 0.0
    %956 = vmatprep.subr.mxu0 0.0
    %957 = vmatpush1.msra.mxu0 0.0
    %958 = vmatprep.subr.mxu0 0.0
    %959 = vmatpush1.msra.mxu0 0.0
    %960 = vmatprep.subr.mxu0 0.0
    %961 = vmatpush1.msra.mxu0 0.0
    %962 = vmatprep.subr.mxu0 0.0
    %963 = vmatpush1.msra.mxu0 0.0
    %964 = vmatprep.mubr.f32.mxu0 0.0
    %965 = vmatmul.mubr.f32.gmra.mrb[0].mxu0 %v827
    %v966 = vpop.f32.mrb[0].mxu0
    %v967 = vadd.f32 %v896, %v966
    %v968 = vpop.f32.mrb[0].mxu0
    %v969 = vadd.f32 %v898, %v968
    %970 = vdwg.mxu0
    %v971 = vmax.f32 %v967, 0.0
    %v972 = vmax.f32 %v969, 0.0
    %v973 = vld [vmem:[%s7] sm:$0xff]
    %v974 = vld [vmem:[%s7 + $0x8] sm:$0xff]
    %v975 = vld [vmem:[%s7 + $0x10] sm:$0xff]
    %v976 = vld [vmem:[%s7 + $0x18] sm:$0xff]
    %v977 = vld [vmem:[%s7 + $0x20] sm:$0xff]
    %v978 = vld [vmem:[%s7 + $0x28] sm:$0xff]
    %v979 = vld [vmem:[%s7 + $0x30] sm:$0xff]
    %v980 = vld [vmem:[%s7 + $0x38] sm:$0xff]
    %v981 = vld [vmem:[%s7 + $0x40] sm:$0xff]
    %v982 = vld [vmem:[%s7 + $0x48] sm:$0xff]
    %v983 = vld [vmem:[%s7 + $0x50] sm:$0xff]
    %v984 = vld [vmem:[%s7 + $0x58] sm:$0xff]
    %v985 = vld [vmem:[%s7 + $0x60] sm:$0xff]
    %v986 = vld [vmem:[%s7 + $0x68] sm:$0xff]
    %v987 = vld [vmem:[%s7 + $0x70] sm:$0xff]
    %v988 = vld [vmem:[%s7 + $0x78] sm:$0xff]
    %v989 = vld [vmem:[%s7 + $0x80] sm:$0xff]
    %v990 = vld [vmem:[%s7 + $0x88] sm:$0xff]
    %v991 = vld [vmem:[%s7 + $0x90] sm:$0xff]
    %v992 = vld [vmem:[%s7 + $0x98] sm:$0xff]
    %v993 = vld [vmem:[%s7 + $0xa0] sm:$0xff]
    %v994 = vld [vmem:[%s7 + $0xa8] sm:$0xff]
    %v995 = vld [vmem:[%s7 + $0xb0] sm:$0xff]
    %v996 = vld [vmem:[%s7 + $0xb8] sm:$0xff]
    %v997 = vld [vmem:[%s7 + $0xc0] sm:$0xff]
    %v998 = vld [vmem:[%s7 + $0xc8] sm:$0xff]
    %v999 = vld [vmem:[%s7 + $0xd0] sm:$0xff]
    %v1000 = vld [vmem:[%s7 + $0xd8] sm:$0xff]
    %v1001 = vld [vmem:[%s8] sm:$0x1]
    %v1003 = vlaneseq
    %v1004 = vshrl.u32 %v1003, 7
    %v1005 = vsub.s32 0, %v1004
    %v1006 = vrot.slane %v1001, %v1005
    %vm1008 = vcmask 785408
    %v1010 = vsel %vm1008, %v972, 0
    %1012 = vmatprep.subr.mxu0 0.0
    %1013 = vmatpush1.msra.mxu0 %v973
    %1014 = vmatprep.subr.mxu0 0.0
    %1015 = vmatpush1.msra.mxu0 %v974
    %1016 = vmatprep.subr.mxu0 0.0
    %1017 = vmatpush1.msra.mxu0 %v975
    %1018 = vmatprep.subr.mxu0 0.0
    %1019 = vmatpush1.msra.mxu0 %v976
    %1020 = vmatprep.subr.mxu0 0.0
    %1021 = vmatpush1.msra.mxu0 %v977
    %1022 = vmatprep.subr.mxu0 0.0
    %1023 = vmatpush1.msra.mxu0 %v978
    %1024 = vmatprep.subr.mxu0 0.0
    %1025 = vmatpush1.msra.mxu0 %v979
    %1026 = vmatprep.subr.mxu0 0.0
    %1027 = vmatpush1.msra.mxu0 %v980
    %1028 = vmatprep.subr.mxu0 0.0
    %1029 = vmatpush1.msra.mxu0 %v981
    %1030 = vmatprep.subr.mxu0 0.0
    %1031 = vmatpush1.msra.mxu0 %v982
    %1032 = vmatprep.subr.mxu0 0.0
    %1033 = vmatpush1.msra.mxu0 %v983
    %1034 = vmatprep.subr.mxu0 0.0
    %1035 = vmatpush1.msra.mxu0 %v984
    %1036 = vmatprep.subr.mxu0 0.0
    %1037 = vmatpush1.msra.mxu0 %v985
    %1038 = vmatprep.subr.mxu0 0.0
    %1039 = vmatpush1.msra.mxu0 %v986
    %1040 = vmatprep.subr.mxu0 0.0
    %1041 = vmatpush1.msra.mxu0 %v987
    %1042 = vmatprep.subr.mxu0 0.0
    %1043 = vmatpush1.msra.mxu0 %v988
    %1044 = vmatprep.subr.mxu0 0.0
    %1045 = vmatpush1.msra.mxu0 %v989
    %1046 = vmatprep.subr.mxu0 0.0
    %1047 = vmatpush1.msra.mxu0 %v990
    %1048 = vmatprep.subr.mxu0 0.0
    %1049 = vmatpush1.msra.mxu0 %v991
    %1050 = vmatprep.subr.mxu0 0.0
    %1051 = vmatpush1.msra.mxu0 %v992
    %1052 = vmatprep.subr.mxu0 0.0
    %1053 = vmatpush1.msra.mxu0 %v993
    %1054 = vmatprep.subr.mxu0 0.0
    %1055 = vmatpush1.msra.mxu0 %v994
    %1056 = vmatprep.subr.mxu0 0.0
    %1057 = vmatpush1.msra.mxu0 %v995
    %1058 = vmatprep.subr.mxu0 0.0
    %1059 = vmatpush1.msra.mxu0 %v996
    %1060 = vmatprep.subr.mxu0 0.0
    %1061 = vmatpush1.msra.mxu0 %v997
    %1062 = vmatprep.subr.mxu0 0.0
    %1063 = vmatpush1.msra.mxu0 %v998
    %1064 = vmatprep.subr.mxu0 0.0
    %1065 = vmatpush1.msra.mxu0 %v999
    %1066 = vmatprep.subr.mxu0 0.0
    %1067 = vmatpush1.msra.mxu0 %v1000
    %1068 = vmatprep.subr.mxu0 0.0
    %1069 = vmatpush1.msra.mxu0 0.0
    %1070 = vmatprep.subr.mxu0 0.0
    %1071 = vmatpush1.msra.mxu0 0.0
    %1072 = vmatprep.subr.mxu0 0.0
    %1073 = vmatpush1.msra.mxu0 0.0
    %1074 = vmatprep.subr.mxu0 0.0
    %1075 = vmatpush1.msra.mxu0 0.0
    %1076 = vmatprep.mubr.f32.mxu0 %v1010
    %1077 = vmatmul.mubr.f32.gmra.mrb[0].mxu0 %v971
    %v1078 = vpop.f32.mrb[0].mxu0
    %v1079 = vadd.f32 %v1006, %v1078
    %v1080 = vpop.f32.mrb[0].mxu0
    %1081 = vdwg.mxu0
    %v1082 = vmax.f32 %v1079, 0.0
    %v1083 = vld [vmem:[%s9] sm:$0xff]
    %v1084 = vld [vmem:[%s9 + $0x8] sm:$0xff]
    %v1085 = vld [vmem:[%s9 + $0x10] sm:$0xff]
    %v1086 = vld [vmem:[%s9 + $0x18] sm:$0xff]
    %v1087 = vld [vmem:[%s9 + $0x20] sm:$0xff]
    %v1088 = vld [vmem:[%s9 + $0x28] sm:$0xf]
    %v1089 = vld [vmem:[%s10] sm:$0x1]
    %v1091 = vlaneseq
    %v1092 = vshrl.u32 %v1091, 7
    %v1093 = vsub.s32 0, %v1092
    %v1094 = vrot.slane %v1089, %v1093
    %vm1096 = vcmask 359424
    %v1098 = vsel %vm1096, %v1082, 0
    %vm1100 = vcmask 1043456
    %v1102 = vsel %vm1100, %v1088, 0
    %1104 = vmatprep.subr.mxu0 0.0
    %1105 = vmatpush1.msra.mxu0 %v1083
    %1106 = vmatprep.subr.mxu0 0.0
    %1107 = vmatpush1.msra.mxu0 %v1084
    %1108 = vmatprep.subr.mxu0 0.0
    %1109 = vmatpush1.msra.mxu0 %v1085
    %1110 = vmatprep.subr.mxu0 0.0
    %1111 = vmatpush1.msra.mxu0 %v1086
    %1112 = vmatprep.subr.mxu0 0.0
    %1113 = vmatpush1.msra.mxu0 %v1087
    %1114 = vmatprep.subr.mxu0 0.0
    %1115 = vmatpush1.msra.mxu0 %v1102
    %1116 = vmatprep.subr.mxu0 0.0
    %1117 = vmatpush1.msra.mxu0 0.0
    %1118 = vmatprep.subr.mxu0 0.0
    %1119 = vmatpush1.msra.mxu0 0.0
    %1120 = vmatprep.subr.mxu0 0.0
    %1121 = vmatpush1.msra.mxu0 0.0
    %1122 = vmatprep.subr.mxu0 0.0
    %1123 = vmatpush1.msra.mxu0 0.0
    %1124 = vmatprep.subr.mxu0 0.0
    %1125 = vmatpush1.msra.mxu0 0.0
    %1126 = vmatprep.subr.mxu0 0.0
    %1127 = vmatpush1.msra.mxu0 0.0
    %1128 = vmatprep.subr.mxu0 0.0
    %1129 = vmatpush1.msra.mxu0 0.0
    %1130 = vmatprep.subr.mxu0 0.0
    %1131 = vmatpush1.msra.mxu0 0.0
    %1132 = vmatprep.subr.mxu0 0.0
    %1133 = vmatpush1.msra.mxu0 0.0
    %1134 = vmatprep.subr.mxu0 0.0
    %1135 = vmatpush1.msra.mxu0 0.0
    %1136 = vmatprep.subr.mxu0 0.0
    %1137 = vmatpush1.msra.mxu0 0.0
    %1138 = vmatprep.subr.mxu0 0.0
    %1139 = vmatpush1.msra.mxu0 0.0
    %1140 = vmatprep.subr.mxu0 0.0
    %1141 = vmatpush1.msra.mxu0 0.0
    %1142 = vmatprep.subr.mxu0 0.0
    %1143 = vmatpush1.msra.mxu0 0.0
    %1144 = vmatprep.subr.mxu0 0.0
    %1145 = vmatpush1.msra.mxu0 0.0
    %1146 = vmatprep.subr.mxu0 0.0
    %1147 = vmatpush1.msra.mxu0 0.0
    %1148 = vmatprep.subr.mxu0 0.0
    %1149 = vmatpush1.msra.mxu0 0.0
    %1150 = vmatprep.subr.mxu0 0.0
    %1151 = vmatpush1.msra.mxu0 0.0
    %1152 = vmatprep.subr.mxu0 0.0
    %1153 = vmatpush1.msra.mxu0 0.0
    %1154 = vmatprep.subr.mxu0 0.0
    %1155 = vmatpush1.msra.mxu0 0.0
    %1156 = vmatprep.subr.mxu0 0.0
    %1157 = vmatpush1.msra.mxu0 0.0
    %1158 = vmatprep.subr.mxu0 0.0
    %1159 = vmatpush1.msra.mxu0 0.0
    %1160 = vmatprep.subr.mxu0 0.0
    %1161 = vmatpush1.msra.mxu0 0.0
    %1162 = vmatprep.subr.mxu0 0.0
    %1163 = vmatpush1.msra.mxu0 0.0
    %1164 = vmatprep.subr.mxu0 0.0
    %1165 = vmatpush1.msra.mxu0 0.0
    %1166 = vmatprep.subr.mxu0 0.0
    %1167 = vmatpush1.msra.mxu0 0.0
    %1168 = vmatprep.mubr.f32.mxu0 0.0
    %1169 = vmatmul.mubr.f32.gmra.mrb[0].mxu0 %v1098
    %v1170 = vpop.f32.mrb[0].mxu0
    %v1171 = vadd.f32 %v1094, %v1170
    %v1172 = vpop.f32.mrb[0].mxu0
    %1173 = vdwg.mxu0
    %v1174 = vmax.f32 %v1171, 0.0
    %v1175 = vld [vmem:[%s11] sm:$0xff]
    %v1176 = vld [vmem:[%s11 + $0x8] sm:$0xff]
    %v1177 = vld [vmem:[%s11 + $0x10] sm:$0x3]
    %v1178 = vld [vmem:[#allocation2] sm:$0x1]
    %v1180 = vlaneseq
    %v1181 = vshrl.u32 %v1180, 7
    %v1182 = vsub.s32 0, %v1181
    %v1183 = vrot.slane %v1178, %v1182
    %vm1185 = vcmask 146432
    %v1187 = vsel %vm1185, %v1174, 0
    %vm1189 = vcmask 1041408
    %v1191 = vsel %vm1189, %v1177, 0
    %1193 = vmatprep.subr.mxu0 0.0
    %1194 = vmatpush1.msra.mxu0 %v1175
    %1195 = vmatprep.subr.mxu0 0.0
    %1196 = vmatpush1.msra.mxu0 %v1176
    %1197 = vmatprep.subr.mxu0 0.0
    %1198 = vmatpush1.msra.mxu0 %v1191
    %1199 = vmatprep.subr.mxu0 0.0
    %1200 = vmatpush1.msra.mxu0 0.0
    %1201 = vmatprep.subr.mxu0 0.0
    %1202 = vmatpush1.msra.mxu0 0.0
    %1203 = vmatprep.subr.mxu0 0.0
    %1204 = vmatpush1.msra.mxu0 0.0
    %1205 = vmatprep.subr.mxu0 0.0
    %1206 = vmatpush1.msra.mxu0 0.0
    %1207 = vmatprep.subr.mxu0 0.0
    %1208 = vmatpush1.msra.mxu0 0.0
    %1209 = vmatprep.subr.mxu0 0.0
    %1210 = vmatpush1.msra.mxu0 0.0
    %1211 = vmatprep.subr.mxu0 0.0
    %1212 = vmatpush1.msra.mxu0 0.0
    %1213 = vmatprep.subr.mxu0 0.0
    %1214 = vmatpush1.msra.mxu0 0.0
    %1215 = vmatprep.subr.mxu0 0.0
    %1216 = vmatpush1.msra.mxu0 0.0
    %1217 = vmatprep.subr.mxu0 0.0
    %1218 = vmatpush1.msra.mxu0 0.0
    %1219 = vmatprep.subr.mxu0 0.0
    %1220 = vmatpush1.msra.mxu0 0.0
    %1221 = vmatprep.subr.mxu0 0.0
    %1222 = vmatpush1.msra.mxu0 0.0
    %1223 = vmatprep.subr.mxu0 0.0
    %1224 = vmatpush1.msra.mxu0 0.0
    %1225 = vmatprep.subr.mxu0 0.0
    %1226 = vmatpush1.msra.mxu0 0.0
    %1227 = vmatprep.subr.mxu0 0.0
    %1228 = vmatpush1.msra.mxu0 0.0
    %1229 = vmatprep.subr.mxu0 0.0
    %1230 = vmatpush1.msra.mxu0 0.0
    %1231 = vmatprep.subr.mxu0 0.0
    %1232 = vmatpush1.msra.mxu0 0.0
    %1233 = vmatprep.subr.mxu0 0.0
    %1234 = vmatpush1.msra.mxu0 0.0
    %1235 = vmatprep.subr.mxu0 0.0
    %1236 = vmatpush1.msra.mxu0 0.0
    %1237 = vmatprep.subr.mxu0 0.0
    %1238 = vmatpush1.msra.mxu0 0.0
    %1239 = vmatprep.subr.mxu0 0.0
    %1240 = vmatpush1.msra.mxu0 0.0
    %1241 = vmatprep.subr.mxu0 0.0
    %1242 = vmatpush1.msra.mxu0 0.0
    %1243 = vmatprep.subr.mxu0 0.0
    %1244 = vmatpush1.msra.mxu0 0.0
    %1245 = vmatprep.subr.mxu0 0.0
    %1246 = vmatpush1.msra.mxu0 0.0
    %1247 = vmatprep.subr.mxu0 0.0
    %1248 = vmatpush1.msra.mxu0 0.0
    %1249 = vmatprep.subr.mxu0 0.0
    %1250 = vmatpush1.msra.mxu0 0.0
    %1251 = vmatprep.subr.mxu0 0.0
    %1252 = vmatpush1.msra.mxu0 0.0
    %1253 = vmatprep.subr.mxu0 0.0
    %1254 = vmatpush1.msra.mxu0 0.0
    %1255 = vmatprep.subr.mxu0 0.0
    %1256 = vmatpush1.msra.mxu0 0.0
    %1257 = vmatprep.mubr.f32.mxu0 0.0
    %1258 = vmatmul.mubr.f32.gmra.mrb[0].mxu0 %v1187
    %v1259 = vpop.f32.mrb[0].mxu0
    %v1260 = vadd.f32 %v1183, %v1259
    %v1261 = vpop.f32.mrb[0].mxu0
    %1262 = vdwg.mxu0
    %v1263 = vxor.u32 %v1260, 2147483648
    %v1264 = vmul.f32 %v1263, 1.442695
    %v1265 = vpow.pop %v1264
    %v1266 = vadd.f32 %v1265, 1.0
    %v1267 = vrcp.pop %v1266
    %v1268 = vmul.f32 1.0, %v1267
    %vm1269 = vcmask 7168
    %1270 = vst.msk [vmem:[%s13] sm:$0xff] %vm1269, %v1268
    // Predicated region
    $region62: #{tpu_custom_call.1} parent=1 // pred_check
      _
    $region63: #{tpu_custom_call.1} parent=1 // pred_check_branch
      %1272 = sbr.rel (0) target = $region65
    $region64: #{tpu_custom_call.1} parent=1 // pred_region
      _
    $region65: #{tpu_custom_call.1} parent=1 // pred_fallthru
      _
    // Predicated region
    $region66: #{tpu_custom_call.1} parent=1 // pred_check
      _
    $region67: #{tpu_custom_call.1} parent=1 // pred_check_branch
      %1274 = sbr.rel (0) target = $region69
    $region68: #{tpu_custom_call.1} parent=1 // pred_region
      _
    $region69: #{tpu_custom_call.1} parent=1 // pred_fallthru
      _
    %1275 = vsyncpa [#allocation4], 1
    %1276 = vsyncpa [#allocation6], 1

</llo_original>
